<compile_context>
chip_gen: v7x
topology: tpu7x:2x2x1
jax: 0.10.0
libtpu: 0.0.40
codegen_flags: <defaults>
</compile_context>

<pallas_src>
import functools

import jax
import jax.numpy as jnp
from jax.experimental import pallas as pl
from jax.experimental.pallas import tpu as pltpu

IN_DIM = 25 * 25 * 3        # 1875
PAD_IN = 1920               # 15 * 128  (lane-dense feature width)
LAT_PAD = 128               # padded latent lane width (real latent = 2)
HID = 256
DIMS = [IN_DIM, 256, 16, 2, 16, 256, IN_DIM]  # original 6-layer chain


def _round_up(n, m):
    return ((n + m - 1) // m) * m


def _autoencoder_kernel(x_ref,
                        w1_ref, b1_ref,
                        w23_ref, b23_ref,
                        w45_ref, b45_ref,
                        w6_ref, b6_ref,
                        out_ref, latent_ref):
    """Fused affine autoencoder on one (TB, 1920) batch tile."""
    x = x_ref[...]  # (TB, 1920) f32, zero-padded features

    # encoder: 1920 -> 256 -> 2 (latent lives in first 2 lanes of 128)
    h = jnp.dot(x, w1_ref[...], preferred_element_type=jnp.float32) + b1_ref[...]
    z = jnp.dot(h, w23_ref[...], preferred_element_type=jnp.float32) + b23_ref[...]
    latent_ref[...] = z  # (TB, 128); cols >= 2 are exactly zero

    # decoder: 2 -> 256 -> 1920
    d = jnp.dot(z, w45_ref[...], preferred_element_type=jnp.float32) + b45_ref[...]
    y = jnp.dot(d, w6_ref[...], preferred_element_type=jnp.float32) + b6_ref[...]
    out_ref[...] = y  # (TB, 1920); cols >= 1875 are exactly zero


def init_params(key):
    """Deterministic init mirroring torch.nn.Linear defaults:
    W, b ~ U(-1/sqrt(fan_in), 1/sqrt(fan_in)).  Weights stored as (in, out)."""
    params = []
    for i in range(6):
        fan_in, fan_out = DIMS[i], DIMS[i + 1]
        key, kw, kb = jax.random.split(key, 3)
        bound = 1.0 / jnp.sqrt(jnp.float32(fan_in))
        w = jax.random.uniform(kw, (fan_in, fan_out), jnp.float32, -bound, bound)
        b = jax.random.uniform(kb, (1, fan_out), jnp.float32, -bound, bound)
        params.append((w, b))
    return params


def _prepare_fused_params(params):
    """Fold the tiny middle layers and zero-pad to lane-friendly widths."""
    (w1, b1), (w2, b2), (w3, b3), (w4, b4), (w5, b5), (w6, b6) = params

    # Fuse encoder layers 2+3 and decoder layers 1+2 (exact affine composition).
    w23 = w2 @ w3                      # (256, 2)
    b23 = b2 @ w3 + b3                 # (1, 2)
    w45 = w4 @ w5                      # (2, 256)
    b45 = b4 @ w5 + b5                 # (1, 256)

    # Zero-pad to lane-dense shapes.
    w1p = jnp.pad(w1, ((0, PAD_IN - IN_DIM), (0, 0)))          # (1920, 256)
    w23p = jnp.pad(w23, ((0, 0), (0, LAT_PAD - 2)))            # (256, 128)
    b23p = jnp.pad(b23, ((0, 0), (0, LAT_PAD - 2)))            # (1, 128)
    w45p = jnp.pad(w45, ((0, LAT_PAD - 2), (0, 0)))            # (128, 256)
    w6p = jnp.pad(w6, ((0, 0), (0, PAD_IN - IN_DIM)))          # (256, 1920)
    b6p = jnp.pad(b6, ((0, 0), (0, PAD_IN - IN_DIM)))          # (1, 1920)

    return w1p, b1, w23p, b23p, w45p, b45, w6p, b6p


@jax.jit
def autoencoder_forward(x_nchw, params):
    """x_nchw: (B, 3, 25, 25) f32 -> (restruct (B,3,25,25), latent (B,2))."""
    B = x_nchw.shape[0]
    x2d = x_nchw.reshape(B, IN_DIM)  # torch.nn.Flatten (row-major, C*H*W)

    # Batch tile: multiple of 8 (f32 sublane), capped at 256 rows so the
    # double-buffered x/out tiles + resident weights stay well under the
    # 32 MiB scoped-VMEM default on every generation (incl. v7x's 64 MiB).
    TB = min(256, _round_up(B, 8))
    B_pad = _round_up(B, TB)

    # Zero-pad batch rows and feature lanes for lane-dense, evenly-divided tiles.
    x_pad = jnp.pad(x2d, ((0, B_pad - B), (0, PAD_IN - IN_DIM)))

    w1p, b1, w23p, b23p, w45p, b45, w6p, b6p = _prepare_fused_params(params)

    const = lambda i: (0, 0)  # weights/biases: resident, never re-fetched
    out2d, latent_pad = pl.pallas_call(
        _autoencoder_kernel,
        grid=(pl.cdiv(B_pad, TB),),
        out_shape=(
            jax.ShapeDtypeStruct((B_pad, PAD_IN), jnp.float32),
            jax.ShapeDtypeStruct((B_pad, LAT_PAD), jnp.float32),
        ),
        in_specs=[
            pl.BlockSpec((TB, PAD_IN), lambda i: (i, 0)),    # x tile
            pl.BlockSpec((PAD_IN, HID), const),              # W1
            pl.BlockSpec((1, HID), const),                   # b1
            pl.BlockSpec((HID, LAT_PAD), const),             # W2@W3 (padded)
            pl.BlockSpec((1, LAT_PAD), const),               # b23   (padded)
            pl.BlockSpec((LAT_PAD, HID), const),             # W4@W5 (padded)
            pl.BlockSpec((1, HID), const),                   # b45
            pl.BlockSpec((HID, PAD_IN), const),              # W6    (padded)
            pl.BlockSpec((1, PAD_IN), const),                # b6    (padded)
        ],
        out_specs=(
            pl.BlockSpec((TB, PAD_IN), lambda i: (i, 0)),    # reconstruction
            pl.BlockSpec((TB, LAT_PAD), lambda i: (i, 0)),   # latent
        ),
        compiler_params=pltpu.CompilerParams(
            dimension_semantics=("parallel",)),
    )(x_pad, w1p, b1, w23p, b23p, w45p, b45, w6p, b6p)

    restruct = out2d[:B, :IN_DIM].reshape(B, 3, 25, 25)  # FlattenTranspose((3,25,25))
    latent = latent_pad[:B, :2]
    return restruct, latent


def _reference_forward(x_nchw, params):
    """Plain-JAX reference: the 6 Linear layers applied one by one."""
    B = x_nchw.shape[0]
    h = x_nchw.reshape(B, IN_DIM)
    outs = []
    for i, (w, b) in enumerate(params):
        h = h @ w + b
        if i == 2:
            outs.append(h)  # latent after en06_Linear
    outs.insert(0, h.reshape(B, 3, 25, 25))
    return outs  # [restruct, latent]


if __name__ == "__main__":
    key = jax.random.PRNGKey(0)
    key, kx = jax.random.split(key)

    B = 2
    x = jax.random.normal(kx, (B, 3, 25, 25), jnp.float32)
    params = init_params(key)

    restruct, latent = autoencoder_forward(x, params)
    restruct = jax.block_until_ready(restruct)
    latent = jax.block_until_ready(latent)

    assert restruct.shape == (B, 3, 25, 25), restruct.shape
    assert latent.shape == (B, 2), latent.shape

    ref_restruct, ref_latent = _reference_forward(x, params)
    err_r = float(jnp.max(jnp.abs(restruct - ref_restruct)))
    err_l = float(jnp.max(jnp.abs(latent - ref_latent)))
    assert err_r < 1e-3, f"reconstruction max abs err {err_r}"
    assert err_l < 1e-3, f"latent max abs err {err_l}"

    print("KERNEL_OK")
</pallas_src>

<mosaic_0001>
module attributes {stable_mosaic.version = 11 : i64} {
  func.func @_autoencoder_kernel(%arg0: i32, %arg1: memref<8x1920xf32, #tpu.memory_space<vmem>>, %arg2: memref<1920x256xf32, #tpu.memory_space<vmem>>, %arg3: memref<1x256xf32, #tpu.memory_space<vmem>>, %arg4: memref<256x128xf32, #tpu.memory_space<vmem>>, %arg5: memref<1x128xf32, #tpu.memory_space<vmem>>, %arg6: memref<128x256xf32, #tpu.memory_space<vmem>>, %arg7: memref<1x256xf32, #tpu.memory_space<vmem>>, %arg8: memref<256x1920xf32, #tpu.memory_space<vmem>>, %arg9: memref<1x1920xf32, #tpu.memory_space<vmem>>, %arg10: memref<8x1920xf32, #tpu.memory_space<vmem>>, %arg11: memref<8x128xf32, #tpu.memory_space<vmem>>) attributes {dimension_semantics = [#tpu.dimension_semantics<parallel>], iteration_bounds = array<i64: 1>, scalar_prefetch = 0 : i64, scratch_operands = 0 : i64, tpu.core_type = #tpu.core_type<tc>, window_params = [{transform_indices = @transform_0, window_bounds = array<i64: 8, 1920>}, {pipeline_mode = #tpu.pipeline_mode<synchronous>, transform_indices = @transform_1, window_bounds = array<i64: 1920, 256>}, {pipeline_mode = #tpu.pipeline_mode<synchronous>, transform_indices = @transform_2, window_bounds = array<i64: 1, 256>}, {pipeline_mode = #tpu.pipeline_mode<synchronous>, transform_indices = @transform_3, window_bounds = array<i64: 256, 128>}, {pipeline_mode = #tpu.pipeline_mode<synchronous>, transform_indices = @transform_4, window_bounds = array<i64: 1, 128>}, {pipeline_mode = #tpu.pipeline_mode<synchronous>, transform_indices = @transform_5, window_bounds = array<i64: 128, 256>}, {pipeline_mode = #tpu.pipeline_mode<synchronous>, transform_indices = @transform_6, window_bounds = array<i64: 1, 256>}, {pipeline_mode = #tpu.pipeline_mode<synchronous>, transform_indices = @transform_7, window_bounds = array<i64: 256, 1920>}, {pipeline_mode = #tpu.pipeline_mode<synchronous>, transform_indices = @transform_8, window_bounds = array<i64: 1, 1920>}, {transform_indices = @transform_9, window_bounds = array<i64: 8, 1920>}, {transform_indices = @transform_10, window_bounds = array<i64: 8, 128>}]} {
    %c0 = arith.constant 0 : index
    %c0_0 = arith.constant 0 : index
    %0 = vector.load %arg1[%c0, %c0_0] : memref<8x1920xf32, #tpu.memory_space<vmem>>, vector<8x1920xf32>
    %c0_1 = arith.constant 0 : index
    %c0_2 = arith.constant 0 : index
    %1 = vector.load %arg2[%c0_1, %c0_2] : memref<1920x256xf32, #tpu.memory_space<vmem>>, vector<1920x256xf32>
    %cst = arith.constant dense<0.000000e+00> : vector<8x256xf32>
    %2 = tpu.matmul %0, %1, %cst {dimension_numbers = #tpu.dot_dimension_numbers<[1], [0], [0], [1], [0, 0, 1, 1], [], []>} : vector<8x1920xf32>, vector<1920x256xf32>, vector<8x256xf32> -> vector<8x256xf32>
    %c0_3 = arith.constant 0 : index
    %c0_4 = arith.constant 0 : index
    %3 = vector.load %arg3[%c0_3, %c0_4] : memref<1x256xf32, #tpu.memory_space<vmem>>, vector<1x256xf32>
    %4 = vector.broadcast %3 : vector<1x256xf32> to vector<8x256xf32>
    %5 = arith.addf %2, %4 : vector<8x256xf32>
    %c0_5 = arith.constant 0 : index
    %c0_6 = arith.constant 0 : index
    %6 = vector.load %arg4[%c0_5, %c0_6] : memref<256x128xf32, #tpu.memory_space<vmem>>, vector<256x128xf32>
    %cst_7 = arith.constant dense<0.000000e+00> : vector<8x128xf32>
    %7 = tpu.matmul %5, %6, %cst_7 {dimension_numbers = #tpu.dot_dimension_numbers<[1], [0], [0], [1], [0, 0, 1, 1], [], []>} : vector<8x256xf32>, vector<256x128xf32>, vector<8x128xf32> -> vector<8x128xf32>
    %c0_8 = arith.constant 0 : index
    %c0_9 = arith.constant 0 : index
    %8 = vector.load %arg5[%c0_8, %c0_9] : memref<1x128xf32, #tpu.memory_space<vmem>>, vector<1x128xf32>
    %9 = vector.broadcast %8 : vector<1x128xf32> to vector<8x128xf32>
    %10 = arith.addf %7, %9 : vector<8x128xf32>
    %c0_10 = arith.constant 0 : index
    %c0_11 = arith.constant 0 : index
    %11 = vector.load %arg11[%c0_10, %c0_11] : memref<8x128xf32, #tpu.memory_space<vmem>>, vector<8x128xf32>
    tpu.vector_store %arg11[%c0_10, %c0_11], %10 {strides = array<i32>} : memref<8x128xf32, #tpu.memory_space<vmem>>, vector<8x128xf32>,
    %c0_12 = arith.constant 0 : index
    %c0_13 = arith.constant 0 : index
    %12 = vector.load %arg6[%c0_12, %c0_13] : memref<128x256xf32, #tpu.memory_space<vmem>>, vector<128x256xf32>
    %cst_14 = arith.constant dense<0.000000e+00> : vector<8x256xf32>
    %13 = tpu.matmul %10, %12, %cst_14 {dimension_numbers = #tpu.dot_dimension_numbers<[1], [0], [0], [1], [0, 0, 1, 1], [], []>} : vector<8x128xf32>, vector<128x256xf32>, vector<8x256xf32> -> vector<8x256xf32>
    %c0_15 = arith.constant 0 : index
    %c0_16 = arith.constant 0 : index
    %14 = vector.load %arg7[%c0_15, %c0_16] : memref<1x256xf32, #tpu.memory_space<vmem>>, vector<1x256xf32>
    %15 = vector.broadcast %14 : vector<1x256xf32> to vector<8x256xf32>
    %16 = arith.addf %13, %15 : vector<8x256xf32>
    %c0_17 = arith.constant 0 : index
    %c0_18 = arith.constant 0 : index
    %17 = vector.load %arg8[%c0_17, %c0_18] : memref<256x1920xf32, #tpu.memory_space<vmem>>, vector<256x1920xf32>
    %cst_19 = arith.constant dense<0.000000e+00> : vector<8x1920xf32>
    %18 = tpu.matmul %16, %17, %cst_19 {dimension_numbers = #tpu.dot_dimension_numbers<[1], [0], [0], [1], [0, 0, 1, 1], [], []>} : vector<8x256xf32>, vector<256x1920xf32>, vector<8x1920xf32> -> vector<8x1920xf32>
    %c0_20 = arith.constant 0 : index
    %c0_21 = arith.constant 0 : index
    %19 = vector.load %arg9[%c0_20, %c0_21] : memref<1x1920xf32, #tpu.memory_space<vmem>>, vector<1x1920xf32>
    %20 = vector.broadcast %19 : vector<1x1920xf32> to vector<8x1920xf32>
    %21 = arith.addf %18, %20 : vector<8x1920xf32>
    %c0_22 = arith.constant 0 : index
    %c0_23 = arith.constant 0 : index
    %22 = vector.load %arg10[%c0_22, %c0_23] : memref<8x1920xf32, #tpu.memory_space<vmem>>, vector<8x1920xf32>
    tpu.vector_store %arg10[%c0_22, %c0_23], %21 {strides = array<i32>} : memref<8x1920xf32, #tpu.memory_space<vmem>>, vector<8x1920xf32>,
    return
  }
  func.func @transform_0(%arg0: i32) -> (i32, i32) {
    %c0_i32 = arith.constant 0 : i32
    %c0_i32_0 = arith.constant 0 : i32
    return %arg0, %c0_i32 : i32, i32
  }
  func.func @transform_1(%arg0: i32) -> (i32, i32) {
    %c0_i32 = arith.constant 0 : i32
    %c0_i32_0 = arith.constant 0 : i32
    %c0_i32_1 = arith.constant 0 : i32
    return %c0_i32, %c0_i32_0 : i32, i32
  }
  func.func @transform_2(%arg0: i32) -> (i32, i32) {
    %c0_i32 = arith.constant 0 : i32
    %c0_i32_0 = arith.constant 0 : i32
    %c0_i32_1 = arith.constant 0 : i32
    return %c0_i32, %c0_i32_0 : i32, i32
  }
  func.func @transform_3(%arg0: i32) -> (i32, i32) {
    %c0_i32 = arith.constant 0 : i32
    %c0_i32_0 = arith.constant 0 : i32
    %c0_i32_1 = arith.constant 0 : i32
    return %c0_i32, %c0_i32_0 : i32, i32
  }
  func.func @transform_4(%arg0: i32) -> (i32, i32) {
    %c0_i32 = arith.constant 0 : i32
    %c0_i32_0 = arith.constant 0 : i32
    %c0_i32_1 = arith.constant 0 : i32
    return %c0_i32, %c0_i32_0 : i32, i32
  }
  func.func @transform_5(%arg0: i32) -> (i32, i32) {
    %c0_i32 = arith.constant 0 : i32
    %c0_i32_0 = arith.constant 0 : i32
    %c0_i32_1 = arith.constant 0 : i32
    return %c0_i32, %c0_i32_0 : i32, i32
  }
  func.func @transform_6(%arg0: i32) -> (i32, i32) {
    %c0_i32 = arith.constant 0 : i32
    %c0_i32_0 = arith.constant 0 : i32
    %c0_i32_1 = arith.constant 0 : i32
    return %c0_i32, %c0_i32_0 : i32, i32
  }
  func.func @transform_7(%arg0: i32) -> (i32, i32) {
    %c0_i32 = arith.constant 0 : i32
    %c0_i32_0 = arith.constant 0 : i32
    %c0_i32_1 = arith.constant 0 : i32
    return %c0_i32, %c0_i32_0 : i32, i32
  }
  func.func @transform_8(%arg0: i32) -> (i32, i32) {
    %c0_i32 = arith.constant 0 : i32
    %c0_i32_0 = arith.constant 0 : i32
    %c0_i32_1 = arith.constant 0 : i32
    return %c0_i32, %c0_i32_0 : i32, i32
  }
  func.func @transform_9(%arg0: i32) -> (i32, i32) {
    %c0_i32 = arith.constant 0 : i32
    %c0_i32_0 = arith.constant 0 : i32
    return %arg0, %c0_i32 : i32, i32
  }
  func.func @transform_10(%arg0: i32) -> (i32, i32) {
    %c0_i32 = arith.constant 0 : i32
    %c0_i32_0 = arith.constant 0 : i32
    return %arg0, %c0_i32 : i32, i32
  }
}

</mosaic_0001>

<llo_original>
// kernel: autoencoder_forward.1
$region0: #{autoencoder_forward.1}
  #allocation0 [shape = 'u32[]', space=smem, size = 0x4, offset = 0x4, fixed_abs, tag = 'smem constant byte address 0x4 - core index']
  #allocation1 [shape = 'u32[144,128]{1,0:T(1,128)}', space=vmem, size = 0x12000, scoped, tag = 'internal scratch']
  %s0 = inlined_call_operand.vmem [shape: f32[8,1920], index: 0, kind: input, shape index: {}]
  %s1 = inlined_call_operand.vmem [shape: f32[1920,256], index: 1, kind: input, shape index: {}]
  %s2 = inlined_call_operand.vmem [shape: f32[1,256], index: 2, kind: input, shape index: {}]
  %s3 = inlined_call_operand.vmem [shape: f32[256,128], index: 3, kind: input, shape index: {}]
  %s4 = inlined_call_operand.vmem [shape: f32[1,128], index: 4, kind: input, shape index: {}]
  %s5 = inlined_call_operand.vmem [shape: f32[128,256], index: 5, kind: input, shape index: {}]
  %s6 = inlined_call_operand.vmem [shape: f32[1,256], index: 6, kind: input, shape index: {}]
  %s7 = inlined_call_operand.vmem [shape: f32[256,1920], index: 7, kind: input, shape index: {}]
  %s8 = inlined_call_operand.vmem [shape: f32[1,1920], index: 8, kind: input, shape index: {}]
  %s9 = inlined_call_operand.vmem [shape: f32[8,1920], index: 9, kind: output, shape index: {0}]
  %s10 = inlined_call_operand.vmem [shape: f32[8,128], index: 10, kind: output, shape index: {1}]
  %11 = xla_tuple %s9, %s10
  %s12 = sld [smem:[#allocation0]]
  $region54: #{autoencoder_forward.1} parent=0
    _
  %s14 = ssub.s32 1, %s12
  %s15 = scalar_select 0, %s14, %s12
  // Predicated region
  $region2: #{autoencoder_forward.1} parent=0 // pred_check
    _
  $region3: #{autoencoder_forward.1} parent=0 // pred_check_branch
    %17 = sbr.rel (0) target = $region5
  $region4: #{autoencoder_forward.1} parent=0 // pred_region
    _
  $region5: #{autoencoder_forward.1} parent=0 // pred_fallthru
    _
  // Predicated region
  $region6: #{autoencoder_forward.1} parent=0 // pred_check
    _
  $region7: #{autoencoder_forward.1} parent=0 // pred_check_branch
    %19 = sbr.rel (0) target = $region9
  $region8: #{autoencoder_forward.1} parent=0 // pred_region
    _
  $region9: #{autoencoder_forward.1} parent=0 // pred_fallthru
    _
  // Predicated region
  $region10: #{autoencoder_forward.1} parent=0 // pred_check
    _
  $region11: #{autoencoder_forward.1} parent=0 // pred_check_branch
    %21 = sbr.rel (0) target = $region13
  $region12: #{autoencoder_forward.1} parent=0 // pred_region
    _
  $region13: #{autoencoder_forward.1} parent=0 // pred_fallthru
    _
  // Predicated region
  $region14: #{autoencoder_forward.1} parent=0 // pred_check
    _
  $region15: #{autoencoder_forward.1} parent=0 // pred_check_branch
    %23 = sbr.rel (0) target = $region17
  $region16: #{autoencoder_forward.1} parent=0 // pred_region
    _
  $region17: #{autoencoder_forward.1} parent=0 // pred_fallthru
    _
  // Predicated region
  $region18: #{autoencoder_forward.1} parent=0 // pred_check
    _
  $region19: #{autoencoder_forward.1} parent=0 // pred_check_branch
    %25 = sbr.rel (0) target = $region21
  $region20: #{autoencoder_forward.1} parent=0 // pred_region
    _
  $region21: #{autoencoder_forward.1} parent=0 // pred_fallthru
    _
  // Predicated region
  $region22: #{autoencoder_forward.1} parent=0 // pred_check
    _
  $region23: #{autoencoder_forward.1} parent=0 // pred_check_branch
    %27 = sbr.rel (0) target = $region25
  $region24: #{autoencoder_forward.1} parent=0 // pred_region
    _
  $region25: #{autoencoder_forward.1} parent=0 // pred_fallthru
    _
  // Predicated region
  $region26: #{autoencoder_forward.1} parent=0 // pred_check
    _
  $region27: #{autoencoder_forward.1} parent=0 // pred_check_branch
    %29 = sbr.rel (0) target = $region29
  $region28: #{autoencoder_forward.1} parent=0 // pred_region
    _
  $region29: #{autoencoder_forward.1} parent=0 // pred_fallthru
    _
  // Predicated region
  $region30: #{autoencoder_forward.1} parent=0 // pred_check
    _
  $region31: #{autoencoder_forward.1} parent=0 // pred_check_branch
    %31 = sbr.rel (0) target = $region33
  $region32: #{autoencoder_forward.1} parent=0 // pred_region
    _
  $region33: #{autoencoder_forward.1} parent=0 // pred_fallthru
    _
  // Predicated region
  $region34: #{autoencoder_forward.1} parent=0 // pred_check
    _
  $region35: #{autoencoder_forward.1} parent=0 // pred_check_branch
    %33 = sbr.rel (0) target = $region37
  $region36: #{autoencoder_forward.1} parent=0 // pred_region
    _
  $region37: #{autoencoder_forward.1} parent=0 // pred_fallthru
    _
  %v34 = vld [vmem:[%s0] sm:$0xff]
  %v35 = vld [vmem:[%s0 + $0x8] sm:$0xff]
  %v36 = vld [vmem:[%s0 + $0x10] sm:$0xff]
  %v37 = vld [vmem:[%s0 + $0x18] sm:$0xff]
  %v38 = vld [vmem:[%s0 + $0x20] sm:$0xff]
  %v39 = vld [vmem:[%s0 + $0x28] sm:$0xff]
  %v40 = vld [vmem:[%s0 + $0x30] sm:$0xff]
  %v41 = vld [vmem:[%s0 + $0x38] sm:$0xff]
  %v42 = vld [vmem:[%s0 + $0x40] sm:$0xff]
  %v43 = vld [vmem:[%s0 + $0x48] sm:$0xff]
  %v44 = vld [vmem:[%s0 + $0x50] sm:$0xff]
  %v45 = vld [vmem:[%s0 + $0x58] sm:$0xff]
  %v46 = vld [vmem:[%s0 + $0x60] sm:$0xff]
  %v47 = vld [vmem:[%s0 + $0x68] sm:$0xff]
  %v48 = vld [vmem:[%s0 + $0x70] sm:$0xff]
  %v49 = vld [vmem:[%s1] sm:$0xff]
  %v50 = vld [vmem:[%s1 + $0x8] sm:$0xff]
  %v51 = vld [vmem:[%s1 + $0x10] sm:$0xff]
  %v52 = vld [vmem:[%s1 + $0x18] sm:$0xff]
  %v53 = vld [vmem:[%s1 + $0x20] sm:$0xff]
  %v54 = vld [vmem:[%s1 + $0x28] sm:$0xff]
  %v55 = vld [vmem:[%s1 + $0x30] sm:$0xff]
  %v56 = vld [vmem:[%s1 + $0x38] sm:$0xff]
  %v57 = vld [vmem:[%s1 + $0x40] sm:$0xff]
  %v58 = vld [vmem:[%s1 + $0x48] sm:$0xff]
  %v59 = vld [vmem:[%s1 + $0x50] sm:$0xff]
  %v60 = vld [vmem:[%s1 + $0x58] sm:$0xff]
  %v61 = vld [vmem:[%s1 + $0x60] sm:$0xff]
  %v62 = vld [vmem:[%s1 + $0x68] sm:$0xff]
  %v63 = vld [vmem:[%s1 + $0x70] sm:$0xff]
  %v64 = vld [vmem:[%s1 + $0x78] sm:$0xff]
  %v65 = vld [vmem:[%s1 + $0x80] sm:$0xff]
  %v66 = vld [vmem:[%s1 + $0x88] sm:$0xff]
  %v67 = vld [vmem:[%s1 + $0x90] sm:$0xff]
  %v68 = vld [vmem:[%s1 + $0x98] sm:$0xff]
  %v69 = vld [vmem:[%s1 + $0xa0] sm:$0xff]
  %v70 = vld [vmem:[%s1 + $0xa8] sm:$0xff]
  %v71 = vld [vmem:[%s1 + $0xb0] sm:$0xff]
  %v72 = vld [vmem:[%s1 + $0xb8] sm:$0xff]
  %v73 = vld [vmem:[%s1 + $0xc0] sm:$0xff]
  %v74 = vld [vmem:[%s1 + $0xc8] sm:$0xff]
  %v75 = vld [vmem:[%s1 + $0xd0] sm:$0xff]
  %v76 = vld [vmem:[%s1 + $0xd8] sm:$0xff]
  %v77 = vld [vmem:[%s1 + $0xe0] sm:$0xff]
  %v78 = vld [vmem:[%s1 + $0xe8] sm:$0xff]
  %v79 = vld [vmem:[%s1 + $0xf0] sm:$0xff]
  %v80 = vld [vmem:[%s1 + $0xf8] sm:$0xff]
  %v81 = vld [vmem:[%s1 + $0x100] sm:$0xff]
  %v82 = vld [vmem:[%s1 + $0x108] sm:$0xff]
  %v83 = vld [vmem:[%s1 + $0x110] sm:$0xff]
  %v84 = vld [vmem:[%s1 + $0x118] sm:$0xff]
  %v85 = vld [vmem:[%s1 + $0x120] sm:$0xff]
  %v86 = vld [vmem:[%s1 + $0x128] sm:$0xff]
  %v87 = vld [vmem:[%s1 + $0x130] sm:$0xff]
  %v88 = vld [vmem:[%s1 + $0x138] sm:$0xff]
  %v89 = vld [vmem:[%s1 + $0x140] sm:$0xff]
  %v90 = vld [vmem:[%s1 + $0x148] sm:$0xff]
  %v91 = vld [vmem:[%s1 + $0x150] sm:$0xff]
  %v92 = vld [vmem:[%s1 + $0x158] sm:$0xff]
  %v93 = vld [vmem:[%s1 + $0x160] sm:$0xff]
  %v94 = vld [vmem:[%s1 + $0x168] sm:$0xff]
  %v95 = vld [vmem:[%s1 + $0x170] sm:$0xff]
  %v96 = vld [vmem:[%s1 + $0x178] sm:$0xff]
  %v97 = vld [vmem:[%s1 + $0x180] sm:$0xff]
  %v98 = vld [vmem:[%s1 + $0x188] sm:$0xff]
  %v99 = vld [vmem:[%s1 + $0x190] sm:$0xff]
  %v100 = vld [vmem:[%s1 + $0x198] sm:$0xff]
  %v101 = vld [vmem:[%s1 + $0x1a0] sm:$0xff]
  %v102 = vld [vmem:[%s1 + $0x1a8] sm:$0xff]
  %v103 = vld [vmem:[%s1 + $0x1b0] sm:$0xff]
  %v104 = vld [vmem:[%s1 + $0x1b8] sm:$0xff]
  %v105 = vld [vmem:[%s1 + $0x1c0] sm:$0xff]
  %v106 = vld [vmem:[%s1 + $0x1c8] sm:$0xff]
  %v107 = vld [vmem:[%s1 + $0x1d0] sm:$0xff]
  %v108 = vld [vmem:[%s1 + $0x1d8] sm:$0xff]
  %v109 = vld [vmem:[%s1 + $0x1e0] sm:$0xff]
  %v110 = vld [vmem:[%s1 + $0x1e8] sm:$0xff]
  %v111 = vld [vmem:[%s1 + $0x1f0] sm:$0xff]
  %v112 = vld [vmem:[%s1 + $0x1f8] sm:$0xff]
  %v113 = vld [vmem:[%s1 + $0x200] sm:$0xff]
  %v114 = vld [vmem:[%s1 + $0x208] sm:$0xff]
  %v115 = vld [vmem:[%s1 + $0x210] sm:$0xff]
  %v116 = vld [vmem:[%s1 + $0x218] sm:$0xff]
  %v117 = vld [vmem:[%s1 + $0x220] sm:$0xff]
  %v118 = vld [vmem:[%s1 + $0x228] sm:$0xff]
  %v119 = vld [vmem:[%s1 + $0x230] sm:$0xff]
  %v120 = vld [vmem:[%s1 + $0x238] sm:$0xff]
  %v121 = vld [vmem:[%s1 + $0x240] sm:$0xff]
  %v122 = vld [vmem:[%s1 + $0x248] sm:$0xff]
  %v123 = vld [vmem:[%s1 + $0x250] sm:$0xff]
  %v124 = vld [vmem:[%s1 + $0x258] sm:$0xff]
  %v125 = vld [vmem:[%s1 + $0x260] sm:$0xff]
  %v126 = vld [vmem:[%s1 + $0x268] sm:$0xff]
  %v127 = vld [vmem:[%s1 + $0x270] sm:$0xff]
  %v128 = vld [vmem:[%s1 + $0x278] sm:$0xff]
  %v129 = vld [vmem:[%s1 + $0x280] sm:$0xff]
  %v130 = vld [vmem:[%s1 + $0x288] sm:$0xff]
  %v131 = vld [vmem:[%s1 + $0x290] sm:$0xff]
  %v132 = vld [vmem:[%s1 + $0x298] sm:$0xff]
  %v133 = vld [vmem:[%s1 + $0x2a0] sm:$0xff]
  %v134 = vld [vmem:[%s1 + $0x2a8] sm:$0xff]
  %v135 = vld [vmem:[%s1 + $0x2b0] sm:$0xff]
  %v136 = vld [vmem:[%s1 + $0x2b8] sm:$0xff]
  %v137 = vld [vmem:[%s1 + $0x2c0] sm:$0xff]
  %v138 = vld [vmem:[%s1 + $0x2c8] sm:$0xff]
  %v139 = vld [vmem:[%s1 + $0x2d0] sm:$0xff]
  %v140 = vld [vmem:[%s1 + $0x2d8] sm:$0xff]
  %v141 = vld [vmem:[%s1 + $0x2e0] sm:$0xff]
  %v142 = vld [vmem:[%s1 + $0x2e8] sm:$0xff]
  %v143 = vld [vmem:[%s1 + $0x2f0] sm:$0xff]
  %v144 = vld [vmem:[%s1 + $0x2f8] sm:$0xff]
  %v145 = vld [vmem:[%s1 + $0x300] sm:$0xff]
  %v146 = vld [vmem:[%s1 + $0x308] sm:$0xff]
  %v147 = vld [vmem:[%s1 + $0x310] sm:$0xff]
  %v148 = vld [vmem:[%s1 + $0x318] sm:$0xff]
  %v149 = vld [vmem:[%s1 + $0x320] sm:$0xff]
  %v150 = vld [vmem:[%s1 + $0x328] sm:$0xff]
  %v151 = vld [vmem:[%s1 + $0x330] sm:$0xff]
  %v152 = vld [vmem:[%s1 + $0x338] sm:$0xff]
  %v153 = vld [vmem:[%s1 + $0x340] sm:$0xff]
  %v154 = vld [vmem:[%s1 + $0x348] sm:$0xff]
  %v155 = vld [vmem:[%s1 + $0x350] sm:$0xff]
  %v156 = vld [vmem:[%s1 + $0x358] sm:$0xff]
  %v157 = vld [vmem:[%s1 + $0x360] sm:$0xff]
  %v158 = vld [vmem:[%s1 + $0x368] sm:$0xff]
  %v159 = vld [vmem:[%s1 + $0x370] sm:$0xff]
  %v160 = vld [vmem:[%s1 + $0x378] sm:$0xff]
  %v161 = vld [vmem:[%s1 + $0x380] sm:$0xff]
  %v162 = vld [vmem:[%s1 + $0x388] sm:$0xff]
  %v163 = vld [vmem:[%s1 + $0x390] sm:$0xff]
  %v164 = vld [vmem:[%s1 + $0x398] sm:$0xff]
  %v165 = vld [vmem:[%s1 + $0x3a0] sm:$0xff]
  %v166 = vld [vmem:[%s1 + $0x3a8] sm:$0xff]
  %v167 = vld [vmem:[%s1 + $0x3b0] sm:$0xff]
  %v168 = vld [vmem:[%s1 + $0x3b8] sm:$0xff]
  %v169 = vld [vmem:[%s1 + $0x3c0] sm:$0xff]
  %v170 = vld [vmem:[%s1 + $0x3c8] sm:$0xff]
  %v171 = vld [vmem:[%s1 + $0x3d0] sm:$0xff]
  %v172 = vld [vmem:[%s1 + $0x3d8] sm:$0xff]
  %v173 = vld [vmem:[%s1 + $0x3e0] sm:$0xff]
  %v174 = vld [vmem:[%s1 + $0x3e8] sm:$0xff]
  %v175 = vld [vmem:[%s1 + $0x3f0] sm:$0xff]
  %v176 = vld [vmem:[%s1 + $0x3f8] sm:$0xff]
  %v177 = vld [vmem:[%s1 + $0x400] sm:$0xff]
  %v178 = vld [vmem:[%s1 + $0x408] sm:$0xff]
  %v179 = vld [vmem:[%s1 + $0x410] sm:$0xff]
  %v180 = vld [vmem:[%s1 + $0x418] sm:$0xff]
  %v181 = vld [vmem:[%s1 + $0x420] sm:$0xff]
  %v182 = vld [vmem:[%s1 + $0x428] sm:$0xff]
  %v183 = vld [vmem:[%s1 + $0x430] sm:$0xff]
  %v184 = vld [vmem:[%s1 + $0x438] sm:$0xff]
  %v185 = vld [vmem:[%s1 + $0x440] sm:$0xff]
  %v186 = vld [vmem:[%s1 + $0x448] sm:$0xff]
  %v187 = vld [vmem:[%s1 + $0x450] sm:$0xff]
  %v188 = vld [vmem:[%s1 + $0x458] sm:$0xff]
  %v189 = vld [vmem:[%s1 + $0x460] sm:$0xff]
  %v190 = vld [vmem:[%s1 + $0x468] sm:$0xff]
  %v191 = vld [vmem:[%s1 + $0x470] sm:$0xff]
  %v192 = vld [vmem:[%s1 + $0x478] sm:$0xff]
  %v193 = vld [vmem:[%s1 + $0x480] sm:$0xff]
  %v194 = vld [vmem:[%s1 + $0x488] sm:$0xff]
  %v195 = vld [vmem:[%s1 + $0x490] sm:$0xff]
  %v196 = vld [vmem:[%s1 + $0x498] sm:$0xff]
  %v197 = vld [vmem:[%s1 + $0x4a0] sm:$0xff]
  %v198 = vld [vmem:[%s1 + $0x4a8] sm:$0xff]
  %v199 = vld [vmem:[%s1 + $0x4b0] sm:$0xff]
  %v200 = vld [vmem:[%s1 + $0x4b8] sm:$0xff]
  %v201 = vld [vmem:[%s1 + $0x4c0] sm:$0xff]
  %v202 = vld [vmem:[%s1 + $0x4c8] sm:$0xff]
  %v203 = vld [vmem:[%s1 + $0x4d0] sm:$0xff]
  %v204 = vld [vmem:[%s1 + $0x4d8] sm:$0xff]
  %v205 = vld [vmem:[%s1 + $0x4e0] sm:$0xff]
  %v206 = vld [vmem:[%s1 + $0x4e8] sm:$0xff]
  %v207 = vld [vmem:[%s1 + $0x4f0] sm:$0xff]
  %v208 = vld [vmem:[%s1 + $0x4f8] sm:$0xff]
  %v209 = vld [vmem:[%s1 + $0x500] sm:$0xff]
  %v210 = vld [vmem:[%s1 + $0x508] sm:$0xff]
  %v211 = vld [vmem:[%s1 + $0x510] sm:$0xff]
  %v212 = vld [vmem:[%s1 + $0x518] sm:$0xff]
  %v213 = vld [vmem:[%s1 + $0x520] sm:$0xff]
  %v214 = vld [vmem:[%s1 + $0x528] sm:$0xff]
  %v215 = vld [vmem:[%s1 + $0x530] sm:$0xff]
  %v216 = vld [vmem:[%s1 + $0x538] sm:$0xff]
  %v217 = vld [vmem:[%s1 + $0x540] sm:$0xff]
  %v218 = vld [vmem:[%s1 + $0x548] sm:$0xff]
  %v219 = vld [vmem:[%s1 + $0x550] sm:$0xff]
  %v220 = vld [vmem:[%s1 + $0x558] sm:$0xff]
  %v221 = vld [vmem:[%s1 + $0x560] sm:$0xff]
  %v222 = vld [vmem:[%s1 + $0x568] sm:$0xff]
  %v223 = vld [vmem:[%s1 + $0x570] sm:$0xff]
  %v224 = vld [vmem:[%s1 + $0x578] sm:$0xff]
  %v225 = vld [vmem:[%s1 + $0x580] sm:$0xff]
  %v226 = vld [vmem:[%s1 + $0x588] sm:$0xff]
  %v227 = vld [vmem:[%s1 + $0x590] sm:$0xff]
  %v228 = vld [vmem:[%s1 + $0x598] sm:$0xff]
  %v229 = vld [vmem:[%s1 + $0x5a0] sm:$0xff]
  %v230 = vld [vmem:[%s1 + $0x5a8] sm:$0xff]
  %v231 = vld [vmem:[%s1 + $0x5b0] sm:$0xff]
  %v232 = vld [vmem:[%s1 + $0x5b8] sm:$0xff]
  %v233 = vld [vmem:[%s1 + $0x5c0] sm:$0xff]
  %v234 = vld [vmem:[%s1 + $0x5c8] sm:$0xff]
  %v235 = vld [vmem:[%s1 + $0x5d0] sm:$0xff]
  %v236 = vld [vmem:[%s1 + $0x5d8] sm:$0xff]
  %v237 = vld [vmem:[%s1 + $0x5e0] sm:$0xff]
  %v238 = vld [vmem:[%s1 + $0x5e8] sm:$0xff]
  %v239 = vld [vmem:[%s1 + $0x5f0] sm:$0xff]
  %v240 = vld [vmem:[%s1 + $0x5f8] sm:$0xff]
  %v241 = vld [vmem:[%s1 + $0x600] sm:$0xff]
  %v242 = vld [vmem:[%s1 + $0x608] sm:$0xff]
  %v243 = vld [vmem:[%s1 + $0x610] sm:$0xff]
  %v244 = vld [vmem:[%s1 + $0x618] sm:$0xff]
  %v245 = vld [vmem:[%s1 + $0x620] sm:$0xff]
  %v246 = vld [vmem:[%s1 + $0x628] sm:$0xff]
  %v247 = vld [vmem:[%s1 + $0x630] sm:$0xff]
  %v248 = vld [vmem:[%s1 + $0x638] sm:$0xff]
  %v249 = vld [vmem:[%s1 + $0x640] sm:$0xff]
  %v250 = vld [vmem:[%s1 + $0x648] sm:$0xff]
  %v251 = vld [vmem:[%s1 + $0x650] sm:$0xff]
  %v252 = vld [vmem:[%s1 + $0x658] sm:$0xff]
  %v253 = vld [vmem:[%s1 + $0x660] sm:$0xff]
  %v254 = vld [vmem:[%s1 + $0x668] sm:$0xff]
  %v255 = vld [vmem:[%s1 + $0x670] sm:$0xff]
  %v256 = vld [vmem:[%s1 + $0x678] sm:$0xff]
  %v257 = vld [vmem:[%s1 + $0x680] sm:$0xff]
  %v258 = vld [vmem:[%s1 + $0x688] sm:$0xff]
  %v259 = vld [vmem:[%s1 + $0x690] sm:$0xff]
  %v260 = vld [vmem:[%s1 + $0x698] sm:$0xff]
  %v261 = vld [vmem:[%s1 + $0x6a0] sm:$0xff]
  %v262 = vld [vmem:[%s1 + $0x6a8] sm:$0xff]
  %v263 = vld [vmem:[%s1 + $0x6b0] sm:$0xff]
  %v264 = vld [vmem:[%s1 + $0x6b8] sm:$0xff]
  %v265 = vld [vmem:[%s1 + $0x6c0] sm:$0xff]
  %v266 = vld [vmem:[%s1 + $0x6c8] sm:$0xff]
  %v267 = vld [vmem:[%s1 + $0x6d0] sm:$0xff]
  %v268 = vld [vmem:[%s1 + $0x6d8] sm:$0xff]
  %v269 = vld [vmem:[%s1 + $0x6e0] sm:$0xff]
  %v270 = vld [vmem:[%s1 + $0x6e8] sm:$0xff]
  %v271 = vld [vmem:[%s1 + $0x6f0] sm:$0xff]
  %v272 = vld [vmem:[%s1 + $0x6f8] sm:$0xff]
  %v273 = vld [vmem:[%s1 + $0x700] sm:$0xff]
  %v274 = vld [vmem:[%s1 + $0x708] sm:$0xff]
  %v275 = vld [vmem:[%s1 + $0x710] sm:$0xff]
  %v276 = vld [vmem:[%s1 + $0x718] sm:$0xff]
  %v277 = vld [vmem:[%s1 + $0x720] sm:$0xff]
  %v278 = vld [vmem:[%s1 + $0x728] sm:$0xff]
  %v279 = vld [vmem:[%s1 + $0x730] sm:$0xff]
  %v280 = vld [vmem:[%s1 + $0x738] sm:$0xff]
  %v281 = vld [vmem:[%s1 + $0x740] sm:$0xff]
  %v282 = vld [vmem:[%s1 + $0x748] sm:$0xff]
  %v283 = vld [vmem:[%s1 + $0x750] sm:$0xff]
  %v284 = vld [vmem:[%s1 + $0x758] sm:$0xff]
  %v285 = vld [vmem:[%s1 + $0x760] sm:$0xff]
  %v286 = vld [vmem:[%s1 + $0x768] sm:$0xff]
  %v287 = vld [vmem:[%s1 + $0x770] sm:$0xff]
  %v288 = vld [vmem:[%s1 + $0x778] sm:$0xff]
  %v289 = vld [vmem:[%s1 + $0x780] sm:$0xff]
  %v290 = vld [vmem:[%s1 + $0x788] sm:$0xff]
  %v291 = vld [vmem:[%s1 + $0x790] sm:$0xff]
  %v292 = vld [vmem:[%s1 + $0x798] sm:$0xff]
  %v293 = vld [vmem:[%s1 + $0x7a0] sm:$0xff]
  %v294 = vld [vmem:[%s1 + $0x7a8] sm:$0xff]
  %v295 = vld [vmem:[%s1 + $0x7b0] sm:$0xff]
  %v296 = vld [vmem:[%s1 + $0x7b8] sm:$0xff]
  %v297 = vld [vmem:[%s1 + $0x7c0] sm:$0xff]
  %v298 = vld [vmem:[%s1 + $0x7c8] sm:$0xff]
  %v299 = vld [vmem:[%s1 + $0x7d0] sm:$0xff]
  %v300 = vld [vmem:[%s1 + $0x7d8] sm:$0xff]
  %v301 = vld [vmem:[%s1 + $0x7e0] sm:$0xff]
  %v302 = vld [vmem:[%s1 + $0x7e8] sm:$0xff]
  %v303 = vld [vmem:[%s1 + $0x7f0] sm:$0xff]
  %v304 = vld [vmem:[%s1 + $0x7f8] sm:$0xff]
  %v305 = vld [vmem:[%s1 + $0x800] sm:$0xff]
  %v306 = vld [vmem:[%s1 + $0x808] sm:$0xff]
  %v307 = vld [vmem:[%s1 + $0x810] sm:$0xff]
  %v308 = vld [vmem:[%s1 + $0x818] sm:$0xff]
  %v309 = vld [vmem:[%s1 + $0x820] sm:$0xff]
  %v310 = vld [vmem:[%s1 + $0x828] sm:$0xff]
  %v311 = vld [vmem:[%s1 + $0x830] sm:$0xff]
  %v312 = vld [vmem:[%s1 + $0x838] sm:$0xff]
  %v313 = vld [vmem:[%s1 + $0x840] sm:$0xff]
  %v314 = vld [vmem:[%s1 + $0x848] sm:$0xff]
  %v315 = vld [vmem:[%s1 + $0x850] sm:$0xff]
  %v316 = vld [vmem:[%s1 + $0x858] sm:$0xff]
  %v317 = vld [vmem:[%s1 + $0x860] sm:$0xff]
  %v318 = vld [vmem:[%s1 + $0x868] sm:$0xff]
  %v319 = vld [vmem:[%s1 + $0x870] sm:$0xff]
  %v320 = vld [vmem:[%s1 + $0x878] sm:$0xff]
  %v321 = vld [vmem:[%s1 + $0x880] sm:$0xff]
  %v322 = vld [vmem:[%s1 + $0x888] sm:$0xff]
  %v323 = vld [vmem:[%s1 + $0x890] sm:$0xff]
  %v324 = vld [vmem:[%s1 + $0x898] sm:$0xff]
  %v325 = vld [vmem:[%s1 + $0x8a0] sm:$0xff]
  %v326 = vld [vmem:[%s1 + $0x8a8] sm:$0xff]
  %v327 = vld [vmem:[%s1 + $0x8b0] sm:$0xff]
  %v328 = vld [vmem:[%s1 + $0x8b8] sm:$0xff]
  %v329 = vld [vmem:[%s1 + $0x8c0] sm:$0xff]
  %v330 = vld [vmem:[%s1 + $0x8c8] sm:$0xff]
  %v331 = vld [vmem:[%s1 + $0x8d0] sm:$0xff]
  %v332 = vld [vmem:[%s1 + $0x8d8] sm:$0xff]
  %v333 = vld [vmem:[%s1 + $0x8e0] sm:$0xff]
  %v334 = vld [vmem:[%s1 + $0x8e8] sm:$0xff]
  %v335 = vld [vmem:[%s1 + $0x8f0] sm:$0xff]
  %v336 = vld [vmem:[%s1 + $0x8f8] sm:$0xff]
  %v337 = vld [vmem:[%s1 + $0x900] sm:$0xff]
  %v338 = vld [vmem:[%s1 + $0x908] sm:$0xff]
  %v339 = vld [vmem:[%s1 + $0x910] sm:$0xff]
  %v340 = vld [vmem:[%s1 + $0x918] sm:$0xff]
  %v341 = vld [vmem:[%s1 + $0x920] sm:$0xff]
  %v342 = vld [vmem:[%s1 + $0x928] sm:$0xff]
  %v343 = vld [vmem:[%s1 + $0x930] sm:$0xff]
  %v344 = vld [vmem:[%s1 + $0x938] sm:$0xff]
  %v345 = vld [vmem:[%s1 + $0x940] sm:$0xff]
  %v346 = vld [vmem:[%s1 + $0x948] sm:$0xff]
  %v347 = vld [vmem:[%s1 + $0x950] sm:$0xff]
  %v348 = vld [vmem:[%s1 + $0x958] sm:$0xff]
  %v349 = vld [vmem:[%s1 + $0x960] sm:$0xff]
  %v350 = vld [vmem:[%s1 + $0x968] sm:$0xff]
  %v351 = vld [vmem:[%s1 + $0x970] sm:$0xff]
  %v352 = vld [vmem:[%s1 + $0x978] sm:$0xff]
  %v353 = vld [vmem:[%s1 + $0x980] sm:$0xff]
  %v354 = vld [vmem:[%s1 + $0x988] sm:$0xff]
  %v355 = vld [vmem:[%s1 + $0x990] sm:$0xff]
  %v356 = vld [vmem:[%s1 + $0x998] sm:$0xff]
  %v357 = vld [vmem:[%s1 + $0x9a0] sm:$0xff]
  %v358 = vld [vmem:[%s1 + $0x9a8] sm:$0xff]
  %v359 = vld [vmem:[%s1 + $0x9b0] sm:$0xff]
  %v360 = vld [vmem:[%s1 + $0x9b8] sm:$0xff]
  %v361 = vld [vmem:[%s1 + $0x9c0] sm:$0xff]
  %v362 = vld [vmem:[%s1 + $0x9c8] sm:$0xff]
  %v363 = vld [vmem:[%s1 + $0x9d0] sm:$0xff]
  %v364 = vld [vmem:[%s1 + $0x9d8] sm:$0xff]
  %v365 = vld [vmem:[%s1 + $0x9e0] sm:$0xff]
  %v366 = vld [vmem:[%s1 + $0x9e8] sm:$0xff]
  %v367 = vld [vmem:[%s1 + $0x9f0] sm:$0xff]
  %v368 = vld [vmem:[%s1 + $0x9f8] sm:$0xff]
  %v369 = vld [vmem:[%s1 + $0xa00] sm:$0xff]
  %v370 = vld [vmem:[%s1 + $0xa08] sm:$0xff]
  %v371 = vld [vmem:[%s1 + $0xa10] sm:$0xff]
  %v372 = vld [vmem:[%s1 + $0xa18] sm:$0xff]
  %v373 = vld [vmem:[%s1 + $0xa20] sm:$0xff]
  %v374 = vld [vmem:[%s1 + $0xa28] sm:$0xff]
  %v375 = vld [vmem:[%s1 + $0xa30] sm:$0xff]
  %v376 = vld [vmem:[%s1 + $0xa38] sm:$0xff]
  %v377 = vld [vmem:[%s1 + $0xa40] sm:$0xff]
  %v378 = vld [vmem:[%s1 + $0xa48] sm:$0xff]
  %v379 = vld [vmem:[%s1 + $0xa50] sm:$0xff]
  %v380 = vld [vmem:[%s1 + $0xa58] sm:$0xff]
  %v381 = vld [vmem:[%s1 + $0xa60] sm:$0xff]
  %v382 = vld [vmem:[%s1 + $0xa68] sm:$0xff]
  %v383 = vld [vmem:[%s1 + $0xa70] sm:$0xff]
  %v384 = vld [vmem:[%s1 + $0xa78] sm:$0xff]
  %v385 = vld [vmem:[%s1 + $0xa80] sm:$0xff]
  %v386 = vld [vmem:[%s1 + $0xa88] sm:$0xff]
  %v387 = vld [vmem:[%s1 + $0xa90] sm:$0xff]
  %v388 = vld [vmem:[%s1 + $0xa98] sm:$0xff]
  %v389 = vld [vmem:[%s1 + $0xaa0] sm:$0xff]
  %v390 = vld [vmem:[%s1 + $0xaa8] sm:$0xff]
  %v391 = vld [vmem:[%s1 + $0xab0] sm:$0xff]
  %v392 = vld [vmem:[%s1 + $0xab8] sm:$0xff]
  %v393 = vld [vmem:[%s1 + $0xac0] sm:$0xff]
  %v394 = vld [vmem:[%s1 + $0xac8] sm:$0xff]
  %v395 = vld [vmem:[%s1 + $0xad0] sm:$0xff]
  %v396 = vld [vmem:[%s1 + $0xad8] sm:$0xff]
  %v397 = vld [vmem:[%s1 + $0xae0] sm:$0xff]
  %v398 = vld [vmem:[%s1 + $0xae8] sm:$0xff]
  %v399 = vld [vmem:[%s1 + $0xaf0] sm:$0xff]
  %v400 = vld [vmem:[%s1 + $0xaf8] sm:$0xff]
  %v401 = vld [vmem:[%s1 + $0xb00] sm:$0xff]
  %v402 = vld [vmem:[%s1 + $0xb08] sm:$0xff]
  %v403 = vld [vmem:[%s1 + $0xb10] sm:$0xff]
  %v404 = vld [vmem:[%s1 + $0xb18] sm:$0xff]
  %v405 = vld [vmem:[%s1 + $0xb20] sm:$0xff]
  %v406 = vld [vmem:[%s1 + $0xb28] sm:$0xff]
  %v407 = vld [vmem:[%s1 + $0xb30] sm:$0xff]
  %v408 = vld [vmem:[%s1 + $0xb38] sm:$0xff]
  %v409 = vld [vmem:[%s1 + $0xb40] sm:$0xff]
  %v410 = vld [vmem:[%s1 + $0xb48] sm:$0xff]
  %v411 = vld [vmem:[%s1 + $0xb50] sm:$0xff]
  %v412 = vld [vmem:[%s1 + $0xb58] sm:$0xff]
  %v413 = vld [vmem:[%s1 + $0xb60] sm:$0xff]
  %v414 = vld [vmem:[%s1 + $0xb68] sm:$0xff]
  %v415 = vld [vmem:[%s1 + $0xb70] sm:$0xff]
  %v416 = vld [vmem:[%s1 + $0xb78] sm:$0xff]
  %v417 = vld [vmem:[%s1 + $0xb80] sm:$0xff]
  %v418 = vld [vmem:[%s1 + $0xb88] sm:$0xff]
  %v419 = vld [vmem:[%s1 + $0xb90] sm:$0xff]
  %v420 = vld [vmem:[%s1 + $0xb98] sm:$0xff]
  %v421 = vld [vmem:[%s1 + $0xba0] sm:$0xff]
  %v422 = vld [vmem:[%s1 + $0xba8] sm:$0xff]
  %v423 = vld [vmem:[%s1 + $0xbb0] sm:$0xff]
  %v424 = vld [vmem:[%s1 + $0xbb8] sm:$0xff]
  %v425 = vld [vmem:[%s1 + $0xbc0] sm:$0xff]
  %v426 = vld [vmem:[%s1 + $0xbc8] sm:$0xff]
  %v427 = vld [vmem:[%s1 + $0xbd0] sm:$0xff]
  %v428 = vld [vmem:[%s1 + $0xbd8] sm:$0xff]
  %v429 = vld [vmem:[%s1 + $0xbe0] sm:$0xff]
  %v430 = vld [vmem:[%s1 + $0xbe8] sm:$0xff]
  %v431 = vld [vmem:[%s1 + $0xbf0] sm:$0xff]
  %v432 = vld [vmem:[%s1 + $0xbf8] sm:$0xff]
  %v433 = vld [vmem:[%s1 + $0xc00] sm:$0xff]
  %v434 = vld [vmem:[%s1 + $0xc08] sm:$0xff]
  %v435 = vld [vmem:[%s1 + $0xc10] sm:$0xff]
  %v436 = vld [vmem:[%s1 + $0xc18] sm:$0xff]
  %v437 = vld [vmem:[%s1 + $0xc20] sm:$0xff]
  %v438 = vld [vmem:[%s1 + $0xc28] sm:$0xff]
  %v439 = vld [vmem:[%s1 + $0xc30] sm:$0xff]
  %v440 = vld [vmem:[%s1 + $0xc38] sm:$0xff]
  %v441 = vld [vmem:[%s1 + $0xc40] sm:$0xff]
  %v442 = vld [vmem:[%s1 + $0xc48] sm:$0xff]
  %v443 = vld [vmem:[%s1 + $0xc50] sm:$0xff]
  %v444 = vld [vmem:[%s1 + $0xc58] sm:$0xff]
  %v445 = vld [vmem:[%s1 + $0xc60] sm:$0xff]
  %v446 = vld [vmem:[%s1 + $0xc68] sm:$0xff]
  %v447 = vld [vmem:[%s1 + $0xc70] sm:$0xff]
  %v448 = vld [vmem:[%s1 + $0xc78] sm:$0xff]
  %v449 = vld [vmem:[%s1 + $0xc80] sm:$0xff]
  %v450 = vld [vmem:[%s1 + $0xc88] sm:$0xff]
  %v451 = vld [vmem:[%s1 + $0xc90] sm:$0xff]
  %v452 = vld [vmem:[%s1 + $0xc98] sm:$0xff]
  %v453 = vld [vmem:[%s1 + $0xca0] sm:$0xff]
  %v454 = vld [vmem:[%s1 + $0xca8] sm:$0xff]
  %v455 = vld [vmem:[%s1 + $0xcb0] sm:$0xff]
  %v456 = vld [vmem:[%s1 + $0xcb8] sm:$0xff]
  %v457 = vld [vmem:[%s1 + $0xcc0] sm:$0xff]
  %v458 = vld [vmem:[%s1 + $0xcc8] sm:$0xff]
  %v459 = vld [vmem:[%s1 + $0xcd0] sm:$0xff]
  %v460 = vld [vmem:[%s1 + $0xcd8] sm:$0xff]
  %v461 = vld [vmem:[%s1 + $0xce0] sm:$0xff]
  %v462 = vld [vmem:[%s1 + $0xce8] sm:$0xff]
  %v463 = vld [vmem:[%s1 + $0xcf0] sm:$0xff]
  %v464 = vld [vmem:[%s1 + $0xcf8] sm:$0xff]
  %v465 = vld [vmem:[%s1 + $0xd00] sm:$0xff]
  %v466 = vld [vmem:[%s1 + $0xd08] sm:$0xff]
  %v467 = vld [vmem:[%s1 + $0xd10] sm:$0xff]
  %v468 = vld [vmem:[%s1 + $0xd18] sm:$0xff]
  %v469 = vld [vmem:[%s1 + $0xd20] sm:$0xff]
  %v470 = vld [vmem:[%s1 + $0xd28] sm:$0xff]
  %v471 = vld [vmem:[%s1 + $0xd30] sm:$0xff]
  %v472 = vld [vmem:[%s1 + $0xd38] sm:$0xff]
  %v473 = vld [vmem:[%s1 + $0xd40] sm:$0xff]
  %v474 = vld [vmem:[%s1 + $0xd48] sm:$0xff]
  %v475 = vld [vmem:[%s1 + $0xd50] sm:$0xff]
  %v476 = vld [vmem:[%s1 + $0xd58] sm:$0xff]
  %v477 = vld [vmem:[%s1 + $0xd60] sm:$0xff]
  %v478 = vld [vmem:[%s1 + $0xd68] sm:$0xff]
  %v479 = vld [vmem:[%s1 + $0xd70] sm:$0xff]
  %v480 = vld [vmem:[%s1 + $0xd78] sm:$0xff]
  %v481 = vld [vmem:[%s1 + $0xd80] sm:$0xff]
  %v482 = vld [vmem:[%s1 + $0xd88] sm:$0xff]
  %v483 = vld [vmem:[%s1 + $0xd90] sm:$0xff]
  %v484 = vld [vmem:[%s1 + $0xd98] sm:$0xff]
  %v485 = vld [vmem:[%s1 + $0xda0] sm:$0xff]
  %v486 = vld [vmem:[%s1 + $0xda8] sm:$0xff]
  %v487 = vld [vmem:[%s1 + $0xdb0] sm:$0xff]
  %v488 = vld [vmem:[%s1 + $0xdb8] sm:$0xff]
  %v489 = vld [vmem:[%s1 + $0xdc0] sm:$0xff]
  %v490 = vld [vmem:[%s1 + $0xdc8] sm:$0xff]
  %v491 = vld [vmem:[%s1 + $0xdd0] sm:$0xff]
  %v492 = vld [vmem:[%s1 + $0xdd8] sm:$0xff]
  %v493 = vld [vmem:[%s1 + $0xde0] sm:$0xff]
  %v494 = vld [vmem:[%s1 + $0xde8] sm:$0xff]
  %v495 = vld [vmem:[%s1 + $0xdf0] sm:$0xff]
  %v496 = vld [vmem:[%s1 + $0xdf8] sm:$0xff]
  %v497 = vld [vmem:[%s1 + $0xe00] sm:$0xff]
  %v498 = vld [vmem:[%s1 + $0xe08] sm:$0xff]
  %v499 = vld [vmem:[%s1 + $0xe10] sm:$0xff]
  %v500 = vld [vmem:[%s1 + $0xe18] sm:$0xff]
  %v501 = vld [vmem:[%s1 + $0xe20] sm:$0xff]
  %v502 = vld [vmem:[%s1 + $0xe28] sm:$0xff]
  %v503 = vld [vmem:[%s1 + $0xe30] sm:$0xff]
  %v504 = vld [vmem:[%s1 + $0xe38] sm:$0xff]
  %v505 = vld [vmem:[%s1 + $0xe40] sm:$0xff]
  %v506 = vld [vmem:[%s1 + $0xe48] sm:$0xff]
  %v507 = vld [vmem:[%s1 + $0xe50] sm:$0xff]
  %v508 = vld [vmem:[%s1 + $0xe58] sm:$0xff]
  %v509 = vld [vmem:[%s1 + $0xe60] sm:$0xff]
  %v510 = vld [vmem:[%s1 + $0xe68] sm:$0xff]
  %v511 = vld [vmem:[%s1 + $0xe70] sm:$0xff]
  %v512 = vld [vmem:[%s1 + $0xe78] sm:$0xff]
  %v513 = vld [vmem:[%s1 + $0xe80] sm:$0xff]
  %v514 = vld [vmem:[%s1 + $0xe88] sm:$0xff]
  %v515 = vld [vmem:[%s1 + $0xe90] sm:$0xff]
  %v516 = vld [vmem:[%s1 + $0xe98] sm:$0xff]
  %v517 = vld [vmem:[%s1 + $0xea0] sm:$0xff]
  %v518 = vld [vmem:[%s1 + $0xea8] sm:$0xff]
  %v519 = vld [vmem:[%s1 + $0xeb0] sm:$0xff]
  %v520 = vld [vmem:[%s1 + $0xeb8] sm:$0xff]
  %v521 = vld [vmem:[%s1 + $0xec0] sm:$0xff]
  %v522 = vld [vmem:[%s1 + $0xec8] sm:$0xff]
  %v523 = vld [vmem:[%s1 + $0xed0] sm:$0xff]
  %v524 = vld [vmem:[%s1 + $0xed8] sm:$0xff]
  %v525 = vld [vmem:[%s1 + $0xee0] sm:$0xff]
  %v526 = vld [vmem:[%s1 + $0xee8] sm:$0xff]
  %v527 = vld [vmem:[%s1 + $0xef0] sm:$0xff]
  %v528 = vld [vmem:[%s1 + $0xef8] sm:$0xff]
  %v529 = vld [vmem:[%s2] sm:$0x3]
  %v531 = vlaneseq
  %v532 = vshrl.u32 %v531, 7
  %v533 = vsub.s32 0, %v532
  %v534 = vrot.slane %v529, %v533
  %v535 = vlaneseq
  %v536 = vshrl.u32 %v535, 7
  %v537 = vsub.s32 1, %v536
  %v538 = vrot.slane %v529, %v537
  %541 = vmatprep.subr.mxu0 %v50
  %542 = vmatpush1.msra.mxu0 %v49
  %543 = vmatprep.subr.mxu0 %v52
  %544 = vmatpush1.msra.mxu0 %v51
  %545 = vmatprep.subr.mxu0 %v54
  %546 = vmatpush1.msra.mxu0 %v53
  %547 = vmatprep.subr.mxu0 %v56
  %548 = vmatpush1.msra.mxu0 %v55
  %549 = vmatprep.subr.mxu0 %v58
  %550 = vmatpush1.msra.mxu0 %v57
  %551 = vmatprep.subr.mxu0 %v60
  %552 = vmatpush1.msra.mxu0 %v59
  %553 = vmatprep.subr.mxu0 %v62
  %554 = vmatpush1.msra.mxu0 %v61
  %555 = vmatprep.subr.mxu0 %v64
  %556 = vmatpush1.msra.mxu0 %v63
  %557 = vmatprep.subr.mxu0 %v66
  %558 = vmatpush1.msra.mxu0 %v65
  %559 = vmatprep.subr.mxu0 %v68
  %560 = vmatpush1.msra.mxu0 %v67
  %561 = vmatprep.subr.mxu0 %v70
  %562 = vmatpush1.msra.mxu0 %v69
  %563 = vmatprep.subr.mxu0 %v72
  %564 = vmatpush1.msra.mxu0 %v71
  %565 = vmatprep.subr.mxu0 %v74
  %566 = vmatpush1.msra.mxu0 %v73
  %567 = vmatprep.subr.mxu0 %v76
  %568 = vmatpush1.msra.mxu0 %v75
  %569 = vmatprep.subr.mxu0 %v78
  %570 = vmatpush1.msra.mxu0 %v77
  %571 = vmatprep.subr.mxu0 %v80
  %572 = vmatpush1.msra.mxu0 %v79
  %573 = vmatprep.subr.mxu0 %v82
  %574 = vmatpush1.msra.mxu0 %v81
  %575 = vmatprep.subr.mxu0 %v84
  %576 = vmatpush1.msra.mxu0 %v83
  %577 = vmatprep.subr.mxu0 %v86
  %578 = vmatpush1.msra.mxu0 %v85
  %579 = vmatprep.subr.mxu0 %v88
  %580 = vmatpush1.msra.mxu0 %v87
  %581 = vmatprep.subr.mxu0 %v90
  %582 = vmatpush1.msra.mxu0 %v89
  %583 = vmatprep.subr.mxu0 %v92
  %584 = vmatpush1.msra.mxu0 %v91
  %585 = vmatprep.subr.mxu0 %v94
  %586 = vmatpush1.msra.mxu0 %v93
  %587 = vmatprep.subr.mxu0 %v96
  %588 = vmatpush1.msra.mxu0 %v95
  %589 = vmatprep.subr.mxu0 %v98
  %590 = vmatpush1.msra.mxu0 %v97
  %591 = vmatprep.subr.mxu0 %v100
  %592 = vmatpush1.msra.mxu0 %v99
  %593 = vmatprep.subr.mxu0 %v102
  %594 = vmatpush1.msra.mxu0 %v101
  %595 = vmatprep.subr.mxu0 %v104
  %596 = vmatpush1.msra.mxu0 %v103
  %597 = vmatprep.subr.mxu0 %v106
  %598 = vmatpush1.msra.mxu0 %v105
  %599 = vmatprep.subr.mxu0 %v108
  %600 = vmatpush1.msra.mxu0 %v107
  %601 = vmatprep.subr.mxu0 %v110
  %602 = vmatpush1.msra.mxu0 %v109
  %603 = vmatprep.subr.mxu0 %v112
  %604 = vmatpush1.msra.mxu0 %v111
  %605 = vmatprep.mubr.f32.mxu0 %v35
  %606 = vmatmul.mubr.f32.gmra.mrb[0].mxu0 %v34
  %v607 = vpop.f32.mrb[0].mxu0
  %v608 = vadd.f32 %v534, %v607
  %v609 = vpop.f32.mrb[0].mxu0
  %v610 = vadd.f32 %v538, %v609
  %611 = vdwg.mxu0
  %612 = vmatprep.subr.mxu0 %v114
  %613 = vmatpush1.msra.mxu0 %v113
  %614 = vmatprep.subr.mxu0 %v116
  %615 = vmatpush1.msra.mxu0 %v115
  %616 = vmatprep.subr.mxu0 %v118
  %617 = vmatpush1.msra.mxu0 %v117
  %618 = vmatprep.subr.mxu0 %v120
  %619 = vmatpush1.msra.mxu0 %v119
  %620 = vmatprep.subr.mxu0 %v122
  %621 = vmatpush1.msra.mxu0 %v121
  %622 = vmatprep.subr.mxu0 %v124
  %623 = vmatpush1.msra.mxu0 %v123
  %624 = vmatprep.subr.mxu0 %v126
  %625 = vmatpush1.msra.mxu0 %v125
  %626 = vmatprep.subr.mxu0 %v128
  %627 = vmatpush1.msra.mxu0 %v127
  %628 = vmatprep.subr.mxu0 %v130
  %629 = vmatpush1.msra.mxu0 %v129
  %630 = vmatprep.subr.mxu0 %v132
  %631 = vmatpush1.msra.mxu0 %v131
  %632 = vmatprep.subr.mxu0 %v134
  %633 = vmatpush1.msra.mxu0 %v133
  %634 = vmatprep.subr.mxu0 %v136
  %635 = vmatpush1.msra.mxu0 %v135
  %636 = vmatprep.subr.mxu0 %v138
  %637 = vmatpush1.msra.mxu0 %v137
  %638 = vmatprep.subr.mxu0 %v140
  %639 = vmatpush1.msra.mxu0 %v139
  %640 = vmatprep.subr.mxu0 %v142
  %641 = vmatpush1.msra.mxu0 %v141
  %642 = vmatprep.subr.mxu0 %v144
  %643 = vmatpush1.msra.mxu0 %v143
  %644 = vmatprep.subr.mxu0 %v146
  %645 = vmatpush1.msra.mxu0 %v145
  %646 = vmatprep.subr.mxu0 %v148
  %647 = vmatpush1.msra.mxu0 %v147
  %648 = vmatprep.subr.mxu0 %v150
  %649 = vmatpush1.msra.mxu0 %v149
  %650 = vmatprep.subr.mxu0 %v152
  %651 = vmatpush1.msra.mxu0 %v151
  %652 = vmatprep.subr.mxu0 %v154
  %653 = vmatpush1.msra.mxu0 %v153
  %654 = vmatprep.subr.mxu0 %v156
  %655 = vmatpush1.msra.mxu0 %v155
  %656 = vmatprep.subr.mxu0 %v158
  %657 = vmatpush1.msra.mxu0 %v157
  %658 = vmatprep.subr.mxu0 %v160
  %659 = vmatpush1.msra.mxu0 %v159
  %660 = vmatprep.subr.mxu0 %v162
  %661 = vmatpush1.msra.mxu0 %v161
  %662 = vmatprep.subr.mxu0 %v164
  %663 = vmatpush1.msra.mxu0 %v163
  %664 = vmatprep.subr.mxu0 %v166
  %665 = vmatpush1.msra.mxu0 %v165
  %666 = vmatprep.subr.mxu0 %v168
  %667 = vmatpush1.msra.mxu0 %v167
  %668 = vmatprep.subr.mxu0 %v170
  %669 = vmatpush1.msra.mxu0 %v169
  %670 = vmatprep.subr.mxu0 %v172
  %671 = vmatpush1.msra.mxu0 %v171
  %672 = vmatprep.subr.mxu0 %v174
  %673 = vmatpush1.msra.mxu0 %v173
  %674 = vmatprep.subr.mxu0 %v176
  %675 = vmatpush1.msra.mxu0 %v175
  %676 = vmatprep.mubr.f32.mxu0 %v37
  %677 = vmatmul.mubr.f32.gmra.mrb[0].mxu0 %v36
  %v678 = vpop.f32.mrb[0].mxu0
  %v679 = vadd.f32 %v608, %v678
  %v680 = vpop.f32.mrb[0].mxu0
  %v681 = vadd.f32 %v610, %v680
  %682 = vdwg.mxu0
  %683 = vmatprep.subr.mxu0 %v178
  %684 = vmatpush1.msra.mxu0 %v177
  %685 = vmatprep.subr.mxu0 %v180
  %686 = vmatpush1.msra.mxu0 %v179
  %687 = vmatprep.subr.mxu0 %v182
  %688 = vmatpush1.msra.mxu0 %v181
  %689 = vmatprep.subr.mxu0 %v184
  %690 = vmatpush1.msra.mxu0 %v183
  %691 = vmatprep.subr.mxu0 %v186
  %692 = vmatpush1.msra.mxu0 %v185
  %693 = vmatprep.subr.mxu0 %v188
  %694 = vmatpush1.msra.mxu0 %v187
  %695 = vmatprep.subr.mxu0 %v190
  %696 = vmatpush1.msra.mxu0 %v189
  %697 = vmatprep.subr.mxu0 %v192
  %698 = vmatpush1.msra.mxu0 %v191
  %699 = vmatprep.subr.mxu0 %v194
  %700 = vmatpush1.msra.mxu0 %v193
  %701 = vmatprep.subr.mxu0 %v196
  %702 = vmatpush1.msra.mxu0 %v195
  %703 = vmatprep.subr.mxu0 %v198
  %704 = vmatpush1.msra.mxu0 %v197
  %705 = vmatprep.subr.mxu0 %v200
  %706 = vmatpush1.msra.mxu0 %v199
  %707 = vmatprep.subr.mxu0 %v202
  %708 = vmatpush1.msra.mxu0 %v201
  %709 = vmatprep.subr.mxu0 %v204
  %710 = vmatpush1.msra.mxu0 %v203
  %711 = vmatprep.subr.mxu0 %v206
  %712 = vmatpush1.msra.mxu0 %v205
  %713 = vmatprep.subr.mxu0 %v208
  %714 = vmatpush1.msra.mxu0 %v207
  %715 = vmatprep.subr.mxu0 %v210
  %716 = vmatpush1.msra.mxu0 %v209
  %717 = vmatprep.subr.mxu0 %v212
  %718 = vmatpush1.msra.mxu0 %v211
  %719 = vmatprep.subr.mxu0 %v214
  %720 = vmatpush1.msra.mxu0 %v213
  %721 = vmatprep.subr.mxu0 %v216
  %722 = vmatpush1.msra.mxu0 %v215
  %723 = vmatprep.subr.mxu0 %v218
  %724 = vmatpush1.msra.mxu0 %v217
  %725 = vmatprep.subr.mxu0 %v220
  %726 = vmatpush1.msra.mxu0 %v219
  %727 = vmatprep.subr.mxu0 %v222
  %728 = vmatpush1.msra.mxu0 %v221
  %729 = vmatprep.subr.mxu0 %v224
  %730 = vmatpush1.msra.mxu0 %v223
  %731 = vmatprep.subr.mxu0 %v226
  %732 = vmatpush1.msra.mxu0 %v225
  %733 = vmatprep.subr.mxu0 %v228
  %734 = vmatpush1.msra.mxu0 %v227
  %735 = vmatprep.subr.mxu0 %v230
  %736 = vmatpush1.msra.mxu0 %v229
  %737 = vmatprep.subr.mxu0 %v232
  %738 = vmatpush1.msra.mxu0 %v231
  %739 = vmatprep.subr.mxu0 %v234
  %740 = vmatpush1.msra.mxu0 %v233
  %741 = vmatprep.subr.mxu0 %v236
  %742 = vmatpush1.msra.mxu0 %v235
  %743 = vmatprep.subr.mxu0 %v238
  %744 = vmatpush1.msra.mxu0 %v237
  %745 = vmatprep.subr.mxu0 %v240
  %746 = vmatpush1.msra.mxu0 %v239
  %747 = vmatprep.mubr.f32.mxu0 %v39
  %748 = vmatmul.mubr.f32.gmra.mrb[0].mxu0 %v38
  %v749 = vpop.f32.mrb[0].mxu0
  %v750 = vadd.f32 %v679, %v749
  %v751 = vpop.f32.mrb[0].mxu0
  %v752 = vadd.f32 %v681, %v751
  %753 = vdwg.mxu0
  %754 = vmatprep.subr.mxu0 %v242
  %755 = vmatpush1.msra.mxu0 %v241
  %756 = vmatprep.subr.mxu0 %v244
  %757 = vmatpush1.msra.mxu0 %v243
  %758 = vmatprep.subr.mxu0 %v246
  %759 = vmatpush1.msra.mxu0 %v245
  %760 = vmatprep.subr.mxu0 %v248
  %761 = vmatpush1.msra.mxu0 %v247
  %762 = vmatprep.subr.mxu0 %v250
  %763 = vmatpush1.msra.mxu0 %v249
  %764 = vmatprep.subr.mxu0 %v252
  %765 = vmatpush1.msra.mxu0 %v251
  %766 = vmatprep.subr.mxu0 %v254
  %767 = vmatpush1.msra.mxu0 %v253
  %768 = vmatprep.subr.mxu0 %v256
  %769 = vmatpush1.msra.mxu0 %v255
  %770 = vmatprep.subr.mxu0 %v258
  %771 = vmatpush1.msra.mxu0 %v257
  %772 = vmatprep.subr.mxu0 %v260
  %773 = vmatpush1.msra.mxu0 %v259
  %774 = vmatprep.subr.mxu0 %v262
  %775 = vmatpush1.msra.mxu0 %v261
  %776 = vmatprep.subr.mxu0 %v264
  %777 = vmatpush1.msra.mxu0 %v263
  %778 = vmatprep.subr.mxu0 %v266
  %779 = vmatpush1.msra.mxu0 %v265
  %780 = vmatprep.subr.mxu0 %v268
  %781 = vmatpush1.msra.mxu0 %v267
  %782 = vmatprep.subr.mxu0 %v270
  %783 = vmatpush1.msra.mxu0 %v269
  %784 = vmatprep.subr.mxu0 %v272
  %785 = vmatpush1.msra.mxu0 %v271
  %786 = vmatprep.subr.mxu0 %v274
  %787 = vmatpush1.msra.mxu0 %v273
  %788 = vmatprep.subr.mxu0 %v276
  %789 = vmatpush1.msra.mxu0 %v275
  %790 = vmatprep.subr.mxu0 %v278
  %791 = vmatpush1.msra.mxu0 %v277
  %792 = vmatprep.subr.mxu0 %v280
  %793 = vmatpush1.msra.mxu0 %v279
  %794 = vmatprep.subr.mxu0 %v282
  %795 = vmatpush1.msra.mxu0 %v281
  %796 = vmatprep.subr.mxu0 %v284
  %797 = vmatpush1.msra.mxu0 %v283
  %798 = vmatprep.subr.mxu0 %v286
  %799 = vmatpush1.msra.mxu0 %v285
  %800 = vmatprep.subr.mxu0 %v288
  %801 = vmatpush1.msra.mxu0 %v287
  %802 = vmatprep.subr.mxu0 %v290
  %803 = vmatpush1.msra.mxu0 %v289
  %804 = vmatprep.subr.mxu0 %v292
  %805 = vmatpush1.msra.mxu0 %v291
  %806 = vmatprep.subr.mxu0 %v294
  %807 = vmatpush1.msra.mxu0 %v293
  %808 = vmatprep.subr.mxu0 %v296
  %809 = vmatpush1.msra.mxu0 %v295
  %810 = vmatprep.subr.mxu0 %v298
  %811 = vmatpush1.msra.mxu0 %v297
  %812 = vmatprep.subr.mxu0 %v300
  %813 = vmatpush1.msra.mxu0 %v299
  %814 = vmatprep.subr.mxu0 %v302
  %815 = vmatpush1.msra.mxu0 %v301
  %816 = vmatprep.subr.mxu0 %v304
  %817 = vmatpush1.msra.mxu0 %v303
  %818 = vmatprep.mubr.f32.mxu0 %v41
  %819 = vmatmul.mubr.f32.gmra.mrb[0].mxu0 %v40
  %v820 = vpop.f32.mrb[0].mxu0
  %v821 = vadd.f32 %v750, %v820
  %v822 = vpop.f32.mrb[0].mxu0
  %v823 = vadd.f32 %v752, %v822
  %824 = vdwg.mxu0
  %825 = vmatprep.subr.mxu0 %v306
  %826 = vmatpush1.msra.mxu0 %v305
  %827 = vmatprep.subr.mxu0 %v308
  %828 = vmatpush1.msra.mxu0 %v307
  %829 = vmatprep.subr.mxu0 %v310
  %830 = vmatpush1.msra.mxu0 %v309
  %831 = vmatprep.subr.mxu0 %v312
  %832 = vmatpush1.msra.mxu0 %v311
  %833 = vmatprep.subr.mxu0 %v314
  %834 = vmatpush1.msra.mxu0 %v313
  %835 = vmatprep.subr.mxu0 %v316
  %836 = vmatpush1.msra.mxu0 %v315
  %837 = vmatprep.subr.mxu0 %v318
  %838 = vmatpush1.msra.mxu0 %v317
  %839 = vmatprep.subr.mxu0 %v320
  %840 = vmatpush1.msra.mxu0 %v319
  %841 = vmatprep.subr.mxu0 %v322
  %842 = vmatpush1.msra.mxu0 %v321
  %843 = vmatprep.subr.mxu0 %v324
  %844 = vmatpush1.msra.mxu0 %v323
  %845 = vmatprep.subr.mxu0 %v326
  %846 = vmatpush1.msra.mxu0 %v325
  %847 = vmatprep.subr.mxu0 %v328
  %848 = vmatpush1.msra.mxu0 %v327
  %849 = vmatprep.subr.mxu0 %v330
  %850 = vmatpush1.msra.mxu0 %v329
  %851 = vmatprep.subr.mxu0 %v332
  %852 = vmatpush1.msra.mxu0 %v331
  %853 = vmatprep.subr.mxu0 %v334
  %854 = vmatpush1.msra.mxu0 %v333
  %855 = vmatprep.subr.mxu0 %v336
  %856 = vmatpush1.msra.mxu0 %v335
  %857 = vmatprep.subr.mxu0 %v338
  %858 = vmatpush1.msra.mxu0 %v337
  %859 = vmatprep.subr.mxu0 %v340
  %860 = vmatpush1.msra.mxu0 %v339
  %861 = vmatprep.subr.mxu0 %v342
  %862 = vmatpush1.msra.mxu0 %v341
  %863 = vmatprep.subr.mxu0 %v344
  %864 = vmatpush1.msra.mxu0 %v343
  %865 = vmatprep.subr.mxu0 %v346
  %866 = vmatpush1.msra.mxu0 %v345
  %867 = vmatprep.subr.mxu0 %v348
  %868 = vmatpush1.msra.mxu0 %v347
  %869 = vmatprep.subr.mxu0 %v350
  %870 = vmatpush1.msra.mxu0 %v349
  %871 = vmatprep.subr.mxu0 %v352
  %872 = vmatpush1.msra.mxu0 %v351
  %873 = vmatprep.subr.mxu0 %v354
  %874 = vmatpush1.msra.mxu0 %v353
  %875 = vmatprep.subr.mxu0 %v356
  %876 = vmatpush1.msra.mxu0 %v355
  %877 = vmatprep.subr.mxu0 %v358
  %878 = vmatpush1.msra.mxu0 %v357
  %879 = vmatprep.subr.mxu0 %v360
  %880 = vmatpush1.msra.mxu0 %v359
  %881 = vmatprep.subr.mxu0 %v362
  %882 = vmatpush1.msra.mxu0 %v361
  %883 = vmatprep.subr.mxu0 %v364
  %884 = vmatpush1.msra.mxu0 %v363
  %885 = vmatprep.subr.mxu0 %v366
  %886 = vmatpush1.msra.mxu0 %v365
  %887 = vmatprep.subr.mxu0 %v368
  %888 = vmatpush1.msra.mxu0 %v367
  %889 = vmatprep.mubr.f32.mxu0 %v43
  %890 = vmatmul.mubr.f32.gmra.mrb[0].mxu0 %v42
  %v891 = vpop.f32.mrb[0].mxu0
  %v892 = vadd.f32 %v821, %v891
  %v893 = vpop.f32.mrb[0].mxu0
  %v894 = vadd.f32 %v823, %v893
  %895 = vdwg.mxu0
  %896 = vmatprep.subr.mxu0 %v370
  %897 = vmatpush1.msra.mxu0 %v369
  %898 = vmatprep.subr.mxu0 %v372
  %899 = vmatpush1.msra.mxu0 %v371
  %900 = vmatprep.subr.mxu0 %v374
  %901 = vmatpush1.msra.mxu0 %v373
  %902 = vmatprep.subr.mxu0 %v376
  %903 = vmatpush1.msra.mxu0 %v375
  %904 = vmatprep.subr.mxu0 %v378
  %905 = vmatpush1.msra.mxu0 %v377
  %906 = vmatprep.subr.mxu0 %v380
  %907 = vmatpush1.msra.mxu0 %v379
  %908 = vmatprep.subr.mxu0 %v382
  %909 = vmatpush1.msra.mxu0 %v381
  %910 = vmatprep.subr.mxu0 %v384
  %911 = vmatpush1.msra.mxu0 %v383
  %912 = vmatprep.subr.mxu0 %v386
  %913 = vmatpush1.msra.mxu0 %v385
  %914 = vmatprep.subr.mxu0 %v388
  %915 = vmatpush1.msra.mxu0 %v387
  %916 = vmatprep.subr.mxu0 %v390
  %917 = vmatpush1.msra.mxu0 %v389
  %918 = vmatprep.subr.mxu0 %v392
  %919 = vmatpush1.msra.mxu0 %v391
  %920 = vmatprep.subr.mxu0 %v394
  %921 = vmatpush1.msra.mxu0 %v393
  %922 = vmatprep.subr.mxu0 %v396
  %923 = vmatpush1.msra.mxu0 %v395
  %924 = vmatprep.subr.mxu0 %v398
  %925 = vmatpush1.msra.mxu0 %v397
  %926 = vmatprep.subr.mxu0 %v400
  %927 = vmatpush1.msra.mxu0 %v399
  %928 = vmatprep.subr.mxu0 %v402
  %929 = vmatpush1.msra.mxu0 %v401
  %930 = vmatprep.subr.mxu0 %v404
  %931 = vmatpush1.msra.mxu0 %v403
  %932 = vmatprep.subr.mxu0 %v406
  %933 = vmatpush1.msra.mxu0 %v405
  %934 = vmatprep.subr.mxu0 %v408
  %935 = vmatpush1.msra.mxu0 %v407
  %936 = vmatprep.subr.mxu0 %v410
  %937 = vmatpush1.msra.mxu0 %v409
  %938 = vmatprep.subr.mxu0 %v412
  %939 = vmatpush1.msra.mxu0 %v411
  %940 = vmatprep.subr.mxu0 %v414
  %941 = vmatpush1.msra.mxu0 %v413
  %942 = vmatprep.subr.mxu0 %v416
  %943 = vmatpush1.msra.mxu0 %v415
  %944 = vmatprep.subr.mxu0 %v418
  %945 = vmatpush1.msra.mxu0 %v417
  %946 = vmatprep.subr.mxu0 %v420
  %947 = vmatpush1.msra.mxu0 %v419
  %948 = vmatprep.subr.mxu0 %v422
  %949 = vmatpush1.msra.mxu0 %v421
  %950 = vmatprep.subr.mxu0 %v424
  %951 = vmatpush1.msra.mxu0 %v423
  %952 = vmatprep.subr.mxu0 %v426
  %953 = vmatpush1.msra.mxu0 %v425
  %954 = vmatprep.subr.mxu0 %v428
  %955 = vmatpush1.msra.mxu0 %v427
  %956 = vmatprep.subr.mxu0 %v430
  %957 = vmatpush1.msra.mxu0 %v429
  %958 = vmatprep.subr.mxu0 %v432
  %959 = vmatpush1.msra.mxu0 %v431
  %960 = vmatprep.mubr.f32.mxu0 %v45
  %961 = vmatmul.mubr.f32.gmra.mrb[0].mxu0 %v44
  %v962 = vpop.f32.mrb[0].mxu0
  %v963 = vadd.f32 %v892, %v962
  %v964 = vpop.f32.mrb[0].mxu0
  %v965 = vadd.f32 %v894, %v964
  %966 = vdwg.mxu0
  %967 = vmatprep.subr.mxu0 %v434
  %968 = vmatpush1.msra.mxu0 %v433
  %969 = vmatprep.subr.mxu0 %v436
  %970 = vmatpush1.msra.mxu0 %v435
  %971 = vmatprep.subr.mxu0 %v438
  %972 = vmatpush1.msra.mxu0 %v437
  %973 = vmatprep.subr.mxu0 %v440
  %974 = vmatpush1.msra.mxu0 %v439
  %975 = vmatprep.subr.mxu0 %v442
  %976 = vmatpush1.msra.mxu0 %v441
  %977 = vmatprep.subr.mxu0 %v444
  %978 = vmatpush1.msra.mxu0 %v443
  %979 = vmatprep.subr.mxu0 %v446
  %980 = vmatpush1.msra.mxu0 %v445
  %981 = vmatprep.subr.mxu0 %v448
  %982 = vmatpush1.msra.mxu0 %v447
  %983 = vmatprep.subr.mxu0 %v450
  %984 = vmatpush1.msra.mxu0 %v449
  %985 = vmatprep.subr.mxu0 %v452
  %986 = vmatpush1.msra.mxu0 %v451
  %987 = vmatprep.subr.mxu0 %v454
  %988 = vmatpush1.msra.mxu0 %v453
  %989 = vmatprep.subr.mxu0 %v456
  %990 = vmatpush1.msra.mxu0 %v455
  %991 = vmatprep.subr.mxu0 %v458
  %992 = vmatpush1.msra.mxu0 %v457
  %993 = vmatprep.subr.mxu0 %v460
  %994 = vmatpush1.msra.mxu0 %v459
  %995 = vmatprep.subr.mxu0 %v462
  %996 = vmatpush1.msra.mxu0 %v461
  %997 = vmatprep.subr.mxu0 %v464
  %998 = vmatpush1.msra.mxu0 %v463
  %999 = vmatprep.subr.mxu0 %v466
  %1000 = vmatpush1.msra.mxu0 %v465
  %1001 = vmatprep.subr.mxu0 %v468
  %1002 = vmatpush1.msra.mxu0 %v467
  %1003 = vmatprep.subr.mxu0 %v470
  %1004 = vmatpush1.msra.mxu0 %v469
  %1005 = vmatprep.subr.mxu0 %v472
  %1006 = vmatpush1.msra.mxu0 %v471
  %1007 = vmatprep.subr.mxu0 %v474
  %1008 = vmatpush1.msra.mxu0 %v473
  %1009 = vmatprep.subr.mxu0 %v476
  %1010 = vmatpush1.msra.mxu0 %v475
  %1011 = vmatprep.subr.mxu0 %v478
  %1012 = vmatpush1.msra.mxu0 %v477
  %1013 = vmatprep.subr.mxu0 %v480
  %1014 = vmatpush1.msra.mxu0 %v479
  %1015 = vmatprep.subr.mxu0 %v482
  %1016 = vmatpush1.msra.mxu0 %v481
  %1017 = vmatprep.subr.mxu0 %v484
  %1018 = vmatpush1.msra.mxu0 %v483
  %1019 = vmatprep.subr.mxu0 %v486
  %1020 = vmatpush1.msra.mxu0 %v485
  %1021 = vmatprep.subr.mxu0 %v488
  %1022 = vmatpush1.msra.mxu0 %v487
  %1023 = vmatprep.subr.mxu0 %v490
  %1024 = vmatpush1.msra.mxu0 %v489
  %1025 = vmatprep.subr.mxu0 %v492
  %1026 = vmatpush1.msra.mxu0 %v491
  %1027 = vmatprep.subr.mxu0 %v494
  %1028 = vmatpush1.msra.mxu0 %v493
  %1029 = vmatprep.subr.mxu0 %v496
  %1030 = vmatpush1.msra.mxu0 %v495
  %1031 = vmatprep.mubr.f32.mxu0 %v47
  %1032 = vmatmul.mubr.f32.gmra.mrb[0].mxu0 %v46
  %v1033 = vpop.f32.mrb[0].mxu0
  %v1034 = vadd.f32 %v963, %v1033
  %v1035 = vpop.f32.mrb[0].mxu0
  %v1036 = vadd.f32 %v965, %v1035
  %1037 = vdwg.mxu0
  %1038 = vmatprep.subr.mxu0 %v498
  %1039 = vmatpush1.msra.mxu0 %v497
  %1040 = vmatprep.subr.mxu0 %v500
  %1041 = vmatpush1.msra.mxu0 %v499
  %1042 = vmatprep.subr.mxu0 %v502
  %1043 = vmatpush1.msra.mxu0 %v501
  %1044 = vmatprep.subr.mxu0 %v504
  %1045 = vmatpush1.msra.mxu0 %v503
  %1046 = vmatprep.subr.mxu0 %v506
  %1047 = vmatpush1.msra.mxu0 %v505
  %1048 = vmatprep.subr.mxu0 %v508
  %1049 = vmatpush1.msra.mxu0 %v507
  %1050 = vmatprep.subr.mxu0 %v510
  %1051 = vmatpush1.msra.mxu0 %v509
  %1052 = vmatprep.subr.mxu0 %v512
  %1053 = vmatpush1.msra.mxu0 %v511
  %1054 = vmatprep.subr.mxu0 %v514
  %1055 = vmatpush1.msra.mxu0 %v513
  %1056 = vmatprep.subr.mxu0 %v516
  %1057 = vmatpush1.msra.mxu0 %v515
  %1058 = vmatprep.subr.mxu0 %v518
  %1059 = vmatpush1.msra.mxu0 %v517
  %1060 = vmatprep.subr.mxu0 %v520
  %1061 = vmatpush1.msra.mxu0 %v519
  %1062 = vmatprep.subr.mxu0 %v522
  %1063 = vmatpush1.msra.mxu0 %v521
  %1064 = vmatprep.subr.mxu0 %v524
  %1065 = vmatpush1.msra.mxu0 %v523
  %1066 = vmatprep.subr.mxu0 %v526
  %1067 = vmatpush1.msra.mxu0 %v525
  %1068 = vmatprep.subr.mxu0 %v528
  %1069 = vmatpush1.msra.mxu0 %v527
  %1070 = vmatprep.subr.mxu0 0.0
  %1071 = vmatpush1.msra.mxu0 0.0
  %1072 = vmatprep.subr.mxu0 0.0
  %1073 = vmatpush1.msra.mxu0 0.0
  %1074 = vmatprep.subr.mxu0 0.0
  %1075 = vmatpush1.msra.mxu0 0.0
  %1076 = vmatprep.subr.mxu0 0.0
  %1077 = vmatpush1.msra.mxu0 0.0
  %1078 = vmatprep.subr.mxu0 0.0
  %1079 = vmatpush1.msra.mxu0 0.0
  %1080 = vmatprep.subr.mxu0 0.0
  %1081 = vmatpush1.msra.mxu0 0.0
  %1082 = vmatprep.subr.mxu0 0.0
  %1083 = vmatpush1.msra.mxu0 0.0
  %1084 = vmatprep.subr.mxu0 0.0
  %1085 = vmatpush1.msra.mxu0 0.0
  %1086 = vmatprep.subr.mxu0 0.0
  %1087 = vmatpush1.msra.mxu0 0.0
  %1088 = vmatprep.subr.mxu0 0.0
  %1089 = vmatpush1.msra.mxu0 0.0
  %1090 = vmatprep.subr.mxu0 0.0
  %1091 = vmatpush1.msra.mxu0 0.0
  %1092 = vmatprep.subr.mxu0 0.0
  %1093 = vmatpush1.msra.mxu0 0.0
  %1094 = vmatprep.subr.mxu0 0.0
  %1095 = vmatpush1.msra.mxu0 0.0
  %1096 = vmatprep.subr.mxu0 0.0
  %1097 = vmatpush1.msra.mxu0 0.0
  %1098 = vmatprep.subr.mxu0 0.0
  %1099 = vmatpush1.msra.mxu0 0.0
  %1100 = vmatprep.subr.mxu0 0.0
  %1101 = vmatpush1.msra.mxu0 0.0
  %1102 = vmatprep.mubr.f32.mxu0 0.0
  %1103 = vmatmul.mubr.f32.gmra.mrb[0].mxu0 %v48
  %v1104 = vpop.f32.mrb[0].mxu0
  %v1105 = vadd.f32 %v1034, %v1104
  %v1106 = vpop.f32.mrb[0].mxu0
  %v1107 = vadd.f32 %v1036, %v1106
  %1108 = vdwg.mxu0
  %v1109 = vld [vmem:[%s3] sm:$0xff]
  %v1110 = vld [vmem:[%s3 + $0x8] sm:$0xff]
  %v1111 = vld [vmem:[%s3 + $0x10] sm:$0xff]
  %v1112 = vld [vmem:[%s3 + $0x18] sm:$0xff]
  %v1113 = vld [vmem:[%s3 + $0x20] sm:$0xff]
  %v1114 = vld [vmem:[%s3 + $0x28] sm:$0xff]
  %v1115 = vld [vmem:[%s3 + $0x30] sm:$0xff]
  %v1116 = vld [vmem:[%s3 + $0x38] sm:$0xff]
  %v1117 = vld [vmem:[%s3 + $0x40] sm:$0xff]
  %v1118 = vld [vmem:[%s3 + $0x48] sm:$0xff]
  %v1119 = vld [vmem:[%s3 + $0x50] sm:$0xff]
  %v1120 = vld [vmem:[%s3 + $0x58] sm:$0xff]
  %v1121 = vld [vmem:[%s3 + $0x60] sm:$0xff]
  %v1122 = vld [vmem:[%s3 + $0x68] sm:$0xff]
  %v1123 = vld [vmem:[%s3 + $0x70] sm:$0xff]
  %v1124 = vld [vmem:[%s3 + $0x78] sm:$0xff]
  %v1125 = vld [vmem:[%s3 + $0x80] sm:$0xff]
  %v1126 = vld [vmem:[%s3 + $0x88] sm:$0xff]
  %v1127 = vld [vmem:[%s3 + $0x90] sm:$0xff]
  %v1128 = vld [vmem:[%s3 + $0x98] sm:$0xff]
  %v1129 = vld [vmem:[%s3 + $0xa0] sm:$0xff]
  %v1130 = vld [vmem:[%s3 + $0xa8] sm:$0xff]
  %v1131 = vld [vmem:[%s3 + $0xb0] sm:$0xff]
  %v1132 = vld [vmem:[%s3 + $0xb8] sm:$0xff]
  %v1133 = vld [vmem:[%s3 + $0xc0] sm:$0xff]
  %v1134 = vld [vmem:[%s3 + $0xc8] sm:$0xff]
  %v1135 = vld [vmem:[%s3 + $0xd0] sm:$0xff]
  %v1136 = vld [vmem:[%s3 + $0xd8] sm:$0xff]
  %v1137 = vld [vmem:[%s3 + $0xe0] sm:$0xff]
  %v1138 = vld [vmem:[%s3 + $0xe8] sm:$0xff]
  %v1139 = vld [vmem:[%s3 + $0xf0] sm:$0xff]
  %v1140 = vld [vmem:[%s3 + $0xf8] sm:$0xff]
  %v1141 = vld [vmem:[%s4] sm:$0x1]
  %v1143 = vlaneseq
  %v1144 = vshrl.u32 %v1143, 7
  %v1145 = vsub.s32 0, %v1144
  %v1146 = vrot.slane %v1141, %v1145
  %1148 = vmatprep.subr.mxu0 0.0
  %1149 = vmatpush1.msra.mxu0 %v1109
  %1150 = vmatprep.subr.mxu0 0.0
  %1151 = vmatpush1.msra.mxu0 %v1110
  %1152 = vmatprep.subr.mxu0 0.0
  %1153 = vmatpush1.msra.mxu0 %v1111
  %1154 = vmatprep.subr.mxu0 0.0
  %1155 = vmatpush1.msra.mxu0 %v1112
  %1156 = vmatprep.subr.mxu0 0.0
  %1157 = vmatpush1.msra.mxu0 %v1113
  %1158 = vmatprep.subr.mxu0 0.0
  %1159 = vmatpush1.msra.mxu0 %v1114
  %1160 = vmatprep.subr.mxu0 0.0
  %1161 = vmatpush1.msra.mxu0 %v1115
  %1162 = vmatprep.subr.mxu0 0.0
  %1163 = vmatpush1.msra.mxu0 %v1116
  %1164 = vmatprep.subr.mxu0 0.0
  %1165 = vmatpush1.msra.mxu0 %v1117
  %1166 = vmatprep.subr.mxu0 0.0
  %1167 = vmatpush1.msra.mxu0 %v1118
  %1168 = vmatprep.subr.mxu0 0.0
  %1169 = vmatpush1.msra.mxu0 %v1119
  %1170 = vmatprep.subr.mxu0 0.0
  %1171 = vmatpush1.msra.mxu0 %v1120
  %1172 = vmatprep.subr.mxu0 0.0
  %1173 = vmatpush1.msra.mxu0 %v1121
  %1174 = vmatprep.subr.mxu0 0.0
  %1175 = vmatpush1.msra.mxu0 %v1122
  %1176 = vmatprep.subr.mxu0 0.0
  %1177 = vmatpush1.msra.mxu0 %v1123
  %1178 = vmatprep.subr.mxu0 0.0
  %1179 = vmatpush1.msra.mxu0 %v1124
  %1180 = vmatprep.subr.mxu0 0.0
  %1181 = vmatpush1.msra.mxu0 %v1125
  %1182 = vmatprep.subr.mxu0 0.0
  %1183 = vmatpush1.msra.mxu0 %v1126
  %1184 = vmatprep.subr.mxu0 0.0
  %1185 = vmatpush1.msra.mxu0 %v1127
  %1186 = vmatprep.subr.mxu0 0.0
  %1187 = vmatpush1.msra.mxu0 %v1128
  %1188 = vmatprep.subr.mxu0 0.0
  %1189 = vmatpush1.msra.mxu0 %v1129
  %1190 = vmatprep.subr.mxu0 0.0
  %1191 = vmatpush1.msra.mxu0 %v1130
  %1192 = vmatprep.subr.mxu0 0.0
  %1193 = vmatpush1.msra.mxu0 %v1131
  %1194 = vmatprep.subr.mxu0 0.0
  %1195 = vmatpush1.msra.mxu0 %v1132
  %1196 = vmatprep.subr.mxu0 0.0
  %1197 = vmatpush1.msra.mxu0 %v1133
  %1198 = vmatprep.subr.mxu0 0.0
  %1199 = vmatpush1.msra.mxu0 %v1134
  %1200 = vmatprep.subr.mxu0 0.0
  %1201 = vmatpush1.msra.mxu0 %v1135
  %1202 = vmatprep.subr.mxu0 0.0
  %1203 = vmatpush1.msra.mxu0 %v1136
  %1204 = vmatprep.subr.mxu0 0.0
  %1205 = vmatpush1.msra.mxu0 %v1137
  %1206 = vmatprep.subr.mxu0 0.0
  %1207 = vmatpush1.msra.mxu0 %v1138
  %1208 = vmatprep.subr.mxu0 0.0
  %1209 = vmatpush1.msra.mxu0 %v1139
  %1210 = vmatprep.subr.mxu0 0.0
  %1211 = vmatpush1.msra.mxu0 %v1140
  %1212 = vmatprep.mubr.f32.mxu0 %v1107
  %1213 = vmatmul.mubr.f32.gmra.mrb[0].mxu0 %v1105
  %v1214 = vpop.f32.mrb[0].mxu0
  %v1215 = vadd.f32 %v1146, %v1214
  %v1216 = vpop.f32.mrb[0].mxu0
  %1217 = vdwg.mxu0
  %1218 = vst [vmem:[%s10] sm:$0xff] %v1215
  %v1219 = vld [vmem:[%s5] sm:$0xff]
  %v1220 = vld [vmem:[%s5 + $0x8] sm:$0xff]
  %v1221 = vld [vmem:[%s5 + $0x10] sm:$0xff]
  %v1222 = vld [vmem:[%s5 + $0x18] sm:$0xff]
  %v1223 = vld [vmem:[%s5 + $0x20] sm:$0xff]
  %v1224 = vld [vmem:[%s5 + $0x28] sm:$0xff]
  %v1225 = vld [vmem:[%s5 + $0x30] sm:$0xff]
  %v1226 = vld [vmem:[%s5 + $0x38] sm:$0xff]
  %v1227 = vld [vmem:[%s5 + $0x40] sm:$0xff]
  %v1228 = vld [vmem:[%s5 + $0x48] sm:$0xff]
  %v1229 = vld [vmem:[%s5 + $0x50] sm:$0xff]
  %v1230 = vld [vmem:[%s5 + $0x58] sm:$0xff]
  %v1231 = vld [vmem:[%s5 + $0x60] sm:$0xff]
  %v1232 = vld [vmem:[%s5 + $0x68] sm:$0xff]
  %v1233 = vld [vmem:[%s5 + $0x70] sm:$0xff]
  %v1234 = vld [vmem:[%s5 + $0x78] sm:$0xff]
  %v1235 = vld [vmem:[%s5 + $0x80] sm:$0xff]
  %v1236 = vld [vmem:[%s5 + $0x88] sm:$0xff]
  %v1237 = vld [vmem:[%s5 + $0x90] sm:$0xff]
  %v1238 = vld [vmem:[%s5 + $0x98] sm:$0xff]
  %v1239 = vld [vmem:[%s5 + $0xa0] sm:$0xff]
  %v1240 = vld [vmem:[%s5 + $0xa8] sm:$0xff]
  %v1241 = vld [vmem:[%s5 + $0xb0] sm:$0xff]
  %v1242 = vld [vmem:[%s5 + $0xb8] sm:$0xff]
  %v1243 = vld [vmem:[%s5 + $0xc0] sm:$0xff]
  %v1244 = vld [vmem:[%s5 + $0xc8] sm:$0xff]
  %v1245 = vld [vmem:[%s5 + $0xd0] sm:$0xff]
  %v1246 = vld [vmem:[%s5 + $0xd8] sm:$0xff]
  %v1247 = vld [vmem:[%s5 + $0xe0] sm:$0xff]
  %v1248 = vld [vmem:[%s5 + $0xe8] sm:$0xff]
  %v1249 = vld [vmem:[%s5 + $0xf0] sm:$0xff]
  %v1250 = vld [vmem:[%s5 + $0xf8] sm:$0xff]
  %v1251 = vld [vmem:[%s6] sm:$0x3]
  %v1253 = vlaneseq
  %v1254 = vshrl.u32 %v1253, 7
  %v1255 = vsub.s32 0, %v1254
  %v1256 = vrot.slane %v1251, %v1255
  %v1257 = vlaneseq
  %v1258 = vshrl.u32 %v1257, 7
  %v1259 = vsub.s32 1, %v1258
  %v1260 = vrot.slane %v1251, %v1259
  %1263 = vmatprep.subr.mxu0 %v1220
  %1264 = vmatpush1.msra.mxu0 %v1219
  %1265 = vmatprep.subr.mxu0 %v1222
  %1266 = vmatpush1.msra.mxu0 %v1221
  %1267 = vmatprep.subr.mxu0 %v1224
  %1268 = vmatpush1.msra.mxu0 %v1223
  %1269 = vmatprep.subr.mxu0 %v1226
  %1270 = vmatpush1.msra.mxu0 %v1225
  %1271 = vmatprep.subr.mxu0 %v1228
  %1272 = vmatpush1.msra.mxu0 %v1227
  %1273 = vmatprep.subr.mxu0 %v1230
  %1274 = vmatpush1.msra.mxu0 %v1229
  %1275 = vmatprep.subr.mxu0 %v1232
  %1276 = vmatpush1.msra.mxu0 %v1231
  %1277 = vmatprep.subr.mxu0 %v1234
  %1278 = vmatpush1.msra.mxu0 %v1233
  %1279 = vmatprep.subr.mxu0 %v1236
  %1280 = vmatpush1.msra.mxu0 %v1235
  %1281 = vmatprep.subr.mxu0 %v1238
  %1282 = vmatpush1.msra.mxu0 %v1237
  %1283 = vmatprep.subr.mxu0 %v1240
  %1284 = vmatpush1.msra.mxu0 %v1239
  %1285 = vmatprep.subr.mxu0 %v1242
  %1286 = vmatpush1.msra.mxu0 %v1241
  %1287 = vmatprep.subr.mxu0 %v1244
  %1288 = vmatpush1.msra.mxu0 %v1243
  %1289 = vmatprep.subr.mxu0 %v1246
  %1290 = vmatpush1.msra.mxu0 %v1245
  %1291 = vmatprep.subr.mxu0 %v1248
  %1292 = vmatpush1.msra.mxu0 %v1247
  %1293 = vmatprep.subr.mxu0 %v1250
  %1294 = vmatpush1.msra.mxu0 %v1249
  %1295 = vmatprep.subr.mxu0 0.0
  %1296 = vmatpush1.msra.mxu0 0.0
  %1297 = vmatprep.subr.mxu0 0.0
  %1298 = vmatpush1.msra.mxu0 0.0
  %1299 = vmatprep.subr.mxu0 0.0
  %1300 = vmatpush1.msra.mxu0 0.0
  %1301 = vmatprep.subr.mxu0 0.0
  %1302 = vmatpush1.msra.mxu0 0.0
  %1303 = vmatprep.subr.mxu0 0.0
  %1304 = vmatpush1.msra.mxu0 0.0
  %1305 = vmatprep.subr.mxu0 0.0
  %1306 = vmatpush1.msra.mxu0 0.0
  %1307 = vmatprep.subr.mxu0 0.0
  %1308 = vmatpush1.msra.mxu0 0.0
  %1309 = vmatprep.subr.mxu0 0.0
  %1310 = vmatpush1.msra.mxu0 0.0
  %1311 = vmatprep.subr.mxu0 0.0
  %1312 = vmatpush1.msra.mxu0 0.0
  %1313 = vmatprep.subr.mxu0 0.0
  %1314 = vmatpush1.msra.mxu0 0.0
  %1315 = vmatprep.subr.mxu0 0.0
  %1316 = vmatpush1.msra.mxu0 0.0
  %1317 = vmatprep.subr.mxu0 0.0
  %1318 = vmatpush1.msra.mxu0 0.0
  %1319 = vmatprep.subr.mxu0 0.0
  %1320 = vmatpush1.msra.mxu0 0.0
  %1321 = vmatprep.subr.mxu0 0.0
  %1322 = vmatpush1.msra.mxu0 0.0
  %1323 = vmatprep.subr.mxu0 0.0
  %1324 = vmatpush1.msra.mxu0 0.0
  %1325 = vmatprep.subr.mxu0 0.0
  %1326 = vmatpush1.msra.mxu0 0.0
  %1327 = vmatprep.mubr.f32.mxu0 0.0
  %1328 = vmatmul.mubr.f32.gmra.mrb[0].mxu0 %v1215
  %v1329 = vpop.f32.mrb[0].mxu0
  %v1330 = vadd.f32 %v1256, %v1329
  %v1331 = vpop.f32.mrb[0].mxu0
  %v1332 = vadd.f32 %v1260, %v1331
  %1333 = vdwg.mxu0
  %v1334 = vld [vmem:[%s7] sm:$0xff]
  %v1335 = vld [vmem:[%s7 + $0x8] sm:$0xff]
  %v1336 = vld [vmem:[%s7 + $0x10] sm:$0xff]
  %v1337 = vld [vmem:[%s7 + $0x18] sm:$0xff]
  %v1338 = vld [vmem:[%s7 + $0x20] sm:$0xff]
  %v1339 = vld [vmem:[%s7 + $0x28] sm:$0xff]
  %v1340 = vld [vmem:[%s7 + $0x30] sm:$0xff]
  %v1341 = vld [vmem:[%s7 + $0x38] sm:$0xff]
  %v1342 = vld [vmem:[%s7 + $0x40] sm:$0xff]
  %v1343 = vld [vmem:[%s7 + $0x48] sm:$0xff]
  %v1344 = vld [vmem:[%s7 + $0x50] sm:$0xff]
  %v1345 = vld [vmem:[%s7 + $0x58] sm:$0xff]
  %v1346 = vld [vmem:[%s7 + $0x60] sm:$0xff]
  %v1347 = vld [vmem:[%s7 + $0x68] sm:$0xff]
  %v1348 = vld [vmem:[%s7 + $0x70] sm:$0xff]
  %v1349 = vld [vmem:[%s7 + $0x78] sm:$0xff]
  %v1350 = vld [vmem:[%s7 + $0x80] sm:$0xff]
  %v1351 = vld [vmem:[%s7 + $0x88] sm:$0xff]
  %v1352 = vld [vmem:[%s7 + $0x90] sm:$0xff]
  %v1353 = vld [vmem:[%s7 + $0x98] sm:$0xff]
  %v1354 = vld [vmem:[%s7 + $0xa0] sm:$0xff]
  %v1355 = vld [vmem:[%s7 + $0xa8] sm:$0xff]
  %v1356 = vld [vmem:[%s7 + $0xb0] sm:$0xff]
  %v1357 = vld [vmem:[%s7 + $0xb8] sm:$0xff]
  %v1358 = vld [vmem:[%s7 + $0xc0] sm:$0xff]
  %v1359 = vld [vmem:[%s7 + $0xc8] sm:$0xff]
  %v1360 = vld [vmem:[%s7 + $0xd0] sm:$0xff]
  %v1361 = vld [vmem:[%s7 + $0xd8] sm:$0xff]
  %v1362 = vld [vmem:[%s7 + $0xe0] sm:$0xff]
  %v1363 = vld [vmem:[%s7 + $0xe8] sm:$0xff]
  %v1364 = vld [vmem:[%s7 + $0xf0] sm:$0xff]
  %v1365 = vld [vmem:[%s7 + $0xf8] sm:$0xff]
  %v1366 = vld [vmem:[%s7 + $0x100] sm:$0xff]
  %v1367 = vld [vmem:[%s7 + $0x108] sm:$0xff]
  %v1368 = vld [vmem:[%s7 + $0x110] sm:$0xff]
  %v1369 = vld [vmem:[%s7 + $0x118] sm:$0xff]
  %v1370 = vld [vmem:[%s7 + $0x120] sm:$0xff]
  %v1371 = vld [vmem:[%s7 + $0x128] sm:$0xff]
  %v1372 = vld [vmem:[%s7 + $0x130] sm:$0xff]
  %v1373 = vld [vmem:[%s7 + $0x138] sm:$0xff]
  %v1374 = vld [vmem:[%s7 + $0x140] sm:$0xff]
  %v1375 = vld [vmem:[%s7 + $0x148] sm:$0xff]
  %v1376 = vld [vmem:[%s7 + $0x150] sm:$0xff]
  %v1377 = vld [vmem:[%s7 + $0x158] sm:$0xff]
  %v1378 = vld [vmem:[%s7 + $0x160] sm:$0xff]
  %v1379 = vld [vmem:[%s7 + $0x168] sm:$0xff]
  %v1380 = vld [vmem:[%s7 + $0x170] sm:$0xff]
  %v1381 = vld [vmem:[%s7 + $0x178] sm:$0xff]
  %v1382 = vld [vmem:[%s7 + $0x180] sm:$0xff]
  %v1383 = vld [vmem:[%s7 + $0x188] sm:$0xff]
  %v1384 = vld [vmem:[%s7 + $0x190] sm:$0xff]
  %v1385 = vld [vmem:[%s7 + $0x198] sm:$0xff]
  %v1386 = vld [vmem:[%s7 + $0x1a0] sm:$0xff]
  %v1387 = vld [vmem:[%s7 + $0x1a8] sm:$0xff]
  %v1388 = vld [vmem:[%s7 + $0x1b0] sm:$0xff]
  %v1389 = vld [vmem:[%s7 + $0x1b8] sm:$0xff]
  %v1390 = vld [vmem:[%s7 + $0x1c0] sm:$0xff]
  %v1391 = vld [vmem:[%s7 + $0x1c8] sm:$0xff]
  %v1392 = vld [vmem:[%s7 + $0x1d0] sm:$0xff]
  %v1393 = vld [vmem:[%s7 + $0x1d8] sm:$0xff]
  %v1394 = vld [vmem:[%s7 + $0x1e0] sm:$0xff]
  %v1395 = vld [vmem:[%s7 + $0x1e8] sm:$0xff]
  %v1396 = vld [vmem:[%s7 + $0x1f0] sm:$0xff]
  %v1397 = vld [vmem:[%s7 + $0x1f8] sm:$0xff]
  %v1398 = vld [vmem:[%s7 + $0x200] sm:$0xff]
  %v1399 = vld [vmem:[%s7 + $0x208] sm:$0xff]
  %v1400 = vld [vmem:[%s7 + $0x210] sm:$0xff]
  %v1401 = vld [vmem:[%s7 + $0x218] sm:$0xff]
  %v1402 = vld [vmem:[%s7 + $0x220] sm:$0xff]
  %v1403 = vld [vmem:[%s7 + $0x228] sm:$0xff]
  %v1404 = vld [vmem:[%s7 + $0x230] sm:$0xff]
  %v1405 = vld [vmem:[%s7 + $0x238] sm:$0xff]
  %v1406 = vld [vmem:[%s7 + $0x240] sm:$0xff]
  %v1407 = vld [vmem:[%s7 + $0x248] sm:$0xff]
  %v1408 = vld [vmem:[%s7 + $0x250] sm:$0xff]
  %v1409 = vld [vmem:[%s7 + $0x258] sm:$0xff]
  %v1410 = vld [vmem:[%s7 + $0x260] sm:$0xff]
  %v1411 = vld [vmem:[%s7 + $0x268] sm:$0xff]
  %v1412 = vld [vmem:[%s7 + $0x270] sm:$0xff]
  %v1413 = vld [vmem:[%s7 + $0x278] sm:$0xff]
  %v1414 = vld [vmem:[%s7 + $0x280] sm:$0xff]
  %v1415 = vld [vmem:[%s7 + $0x288] sm:$0xff]
  %v1416 = vld [vmem:[%s7 + $0x290] sm:$0xff]
  %v1417 = vld [vmem:[%s7 + $0x298] sm:$0xff]
  %v1418 = vld [vmem:[%s7 + $0x2a0] sm:$0xff]
  %v1419 = vld [vmem:[%s7 + $0x2a8] sm:$0xff]
  %v1420 = vld [vmem:[%s7 + $0x2b0] sm:$0xff]
  %v1421 = vld [vmem:[%s7 + $0x2b8] sm:$0xff]
  %v1422 = vld [vmem:[%s7 + $0x2c0] sm:$0xff]
  %v1423 = vld [vmem:[%s7 + $0x2c8] sm:$0xff]
  %v1424 = vld [vmem:[%s7 + $0x2d0] sm:$0xff]
  %v1425 = vld [vmem:[%s7 + $0x2d8] sm:$0xff]
  %v1426 = vld [vmem:[%s7 + $0x2e0] sm:$0xff]
  %v1427 = vld [vmem:[%s7 + $0x2e8] sm:$0xff]
  %v1428 = vld [vmem:[%s7 + $0x2f0] sm:$0xff]
  %v1429 = vld [vmem:[%s7 + $0x2f8] sm:$0xff]
  %v1430 = vld [vmem:[%s7 + $0x300] sm:$0xff]
  %v1431 = vld [vmem:[%s7 + $0x308] sm:$0xff]
  %v1432 = vld [vmem:[%s7 + $0x310] sm:$0xff]
  %v1433 = vld [vmem:[%s7 + $0x318] sm:$0xff]
  %v1434 = vld [vmem:[%s7 + $0x320] sm:$0xff]
  %v1435 = vld [vmem:[%s7 + $0x328] sm:$0xff]
  %v1436 = vld [vmem:[%s7 + $0x330] sm:$0xff]
  %v1437 = vld [vmem:[%s7 + $0x338] sm:$0xff]
  %v1438 = vld [vmem:[%s7 + $0x340] sm:$0xff]
  %v1439 = vld [vmem:[%s7 + $0x348] sm:$0xff]
  %v1440 = vld [vmem:[%s7 + $0x350] sm:$0xff]
  %v1441 = vld [vmem:[%s7 + $0x358] sm:$0xff]
  %v1442 = vld [vmem:[%s7 + $0x360] sm:$0xff]
  %v1443 = vld [vmem:[%s7 + $0x368] sm:$0xff]
  %v1444 = vld [vmem:[%s7 + $0x370] sm:$0xff]
  %v1445 = vld [vmem:[%s7 + $0x378] sm:$0xff]
  %v1446 = vld [vmem:[%s7 + $0x380] sm:$0xff]
  %v1447 = vld [vmem:[%s7 + $0x388] sm:$0xff]
  %v1448 = vld [vmem:[%s7 + $0x390] sm:$0xff]
  %v1449 = vld [vmem:[%s7 + $0x398] sm:$0xff]
  %v1450 = vld [vmem:[%s7 + $0x3a0] sm:$0xff]
  %v1451 = vld [vmem:[%s7 + $0x3a8] sm:$0xff]
  %v1452 = vld [vmem:[%s7 + $0x3b0] sm:$0xff]
  %v1453 = vld [vmem:[%s7 + $0x3b8] sm:$0xff]
  %v1454 = vld [vmem:[%s7 + $0x3c0] sm:$0xff]
  %v1455 = vld [vmem:[%s7 + $0x3c8] sm:$0xff]
  %v1456 = vld [vmem:[%s7 + $0x3d0] sm:$0xff]
  %v1457 = vld [vmem:[%s7 + $0x3d8] sm:$0xff]
  %v1458 = vld [vmem:[%s7 + $0x3e0] sm:$0xff]
  %v1459 = vld [vmem:[%s7 + $0x3e8] sm:$0xff]
  %v1460 = vld [vmem:[%s7 + $0x3f0] sm:$0xff]
  %v1461 = vld [vmem:[%s7 + $0x3f8] sm:$0xff]
  %v1462 = vld [vmem:[%s7 + $0x400] sm:$0xff]
  %v1463 = vld [vmem:[%s7 + $0x408] sm:$0xff]
  %v1464 = vld [vmem:[%s7 + $0x410] sm:$0xff]
  %v1465 = vld [vmem:[%s7 + $0x418] sm:$0xff]
  %v1466 = vld [vmem:[%s7 + $0x420] sm:$0xff]
  %v1467 = vld [vmem:[%s7 + $0x428] sm:$0xff]
  %v1468 = vld [vmem:[%s7 + $0x430] sm:$0xff]
  %v1469 = vld [vmem:[%s7 + $0x438] sm:$0xff]
  %v1470 = vld [vmem:[%s7 + $0x440] sm:$0xff]
  %v1471 = vld [vmem:[%s7 + $0x448] sm:$0xff]
  %v1472 = vld [vmem:[%s7 + $0x450] sm:$0xff]
  %v1473 = vld [vmem:[%s7 + $0x458] sm:$0xff]
  %v1474 = vld [vmem:[%s7 + $0x460] sm:$0xff]
  %v1475 = vld [vmem:[%s7 + $0x468] sm:$0xff]
  %v1476 = vld [vmem:[%s7 + $0x470] sm:$0xff]
  %v1477 = vld [vmem:[%s7 + $0x478] sm:$0xff]
  %v1478 = vld [vmem:[%s7 + $0x480] sm:$0xff]
  %v1479 = vld [vmem:[%s7 + $0x488] sm:$0xff]
  %v1480 = vld [vmem:[%s7 + $0x490] sm:$0xff]
  %v1481 = vld [vmem:[%s7 + $0x498] sm:$0xff]
  %v1482 = vld [vmem:[%s7 + $0x4a0] sm:$0xff]
  %v1483 = vld [vmem:[%s7 + $0x4a8] sm:$0xff]
  %v1484 = vld [vmem:[%s7 + $0x4b0] sm:$0xff]
  %v1485 = vld [vmem:[%s7 + $0x4b8] sm:$0xff]
  %v1486 = vld [vmem:[%s7 + $0x4c0] sm:$0xff]
  %v1487 = vld [vmem:[%s7 + $0x4c8] sm:$0xff]
  %v1488 = vld [vmem:[%s7 + $0x4d0] sm:$0xff]
  %v1489 = vld [vmem:[%s7 + $0x4d8] sm:$0xff]
  %v1490 = vld [vmem:[%s7 + $0x4e0] sm:$0xff]
  %v1491 = vld [vmem:[%s7 + $0x4e8] sm:$0xff]
  %v1492 = vld [vmem:[%s7 + $0x4f0] sm:$0xff]
  %v1493 = vld [vmem:[%s7 + $0x4f8] sm:$0xff]
  %v1494 = vld [vmem:[%s7 + $0x500] sm:$0xff]
  %v1495 = vld [vmem:[%s7 + $0x508] sm:$0xff]
  %v1496 = vld [vmem:[%s7 + $0x510] sm:$0xff]
  %v1497 = vld [vmem:[%s7 + $0x518] sm:$0xff]
  %v1498 = vld [vmem:[%s7 + $0x520] sm:$0xff]
  %v1499 = vld [vmem:[%s7 + $0x528] sm:$0xff]
  %v1500 = vld [vmem:[%s7 + $0x530] sm:$0xff]
  %v1501 = vld [vmem:[%s7 + $0x538] sm:$0xff]
  %v1502 = vld [vmem:[%s7 + $0x540] sm:$0xff]
  %v1503 = vld [vmem:[%s7 + $0x548] sm:$0xff]
  %v1504 = vld [vmem:[%s7 + $0x550] sm:$0xff]
  %v1505 = vld [vmem:[%s7 + $0x558] sm:$0xff]
  %v1506 = vld [vmem:[%s7 + $0x560] sm:$0xff]
  %v1507 = vld [vmem:[%s7 + $0x568] sm:$0xff]
  %v1508 = vld [vmem:[%s7 + $0x570] sm:$0xff]
  %v1509 = vld [vmem:[%s7 + $0x578] sm:$0xff]
  %v1510 = vld [vmem:[%s7 + $0x580] sm:$0xff]
  %v1511 = vld [vmem:[%s7 + $0x588] sm:$0xff]
  %v1512 = vld [vmem:[%s7 + $0x590] sm:$0xff]
  %v1513 = vld [vmem:[%s7 + $0x598] sm:$0xff]
  %v1514 = vld [vmem:[%s7 + $0x5a0] sm:$0xff]
  %v1515 = vld [vmem:[%s7 + $0x5a8] sm:$0xff]
  %v1516 = vld [vmem:[%s7 + $0x5b0] sm:$0xff]
  %v1517 = vld [vmem:[%s7 + $0x5b8] sm:$0xff]
  %v1518 = vld [vmem:[%s7 + $0x5c0] sm:$0xff]
  %v1519 = vld [vmem:[%s7 + $0x5c8] sm:$0xff]
  %v1520 = vld [vmem:[%s7 + $0x5d0] sm:$0xff]
  %v1521 = vld [vmem:[%s7 + $0x5d8] sm:$0xff]
  %v1522 = vld [vmem:[%s7 + $0x5e0] sm:$0xff]
  %v1523 = vld [vmem:[%s7 + $0x5e8] sm:$0xff]
  %v1524 = vld [vmem:[%s7 + $0x5f0] sm:$0xff]
  %v1525 = vld [vmem:[%s7 + $0x5f8] sm:$0xff]
  %v1526 = vld [vmem:[%s7 + $0x600] sm:$0xff]
  %v1527 = vld [vmem:[%s7 + $0x608] sm:$0xff]
  %v1528 = vld [vmem:[%s7 + $0x610] sm:$0xff]
  %v1529 = vld [vmem:[%s7 + $0x618] sm:$0xff]
  %v1530 = vld [vmem:[%s7 + $0x620] sm:$0xff]
  %v1531 = vld [vmem:[%s7 + $0x628] sm:$0xff]
  %v1532 = vld [vmem:[%s7 + $0x630] sm:$0xff]
  %v1533 = vld [vmem:[%s7 + $0x638] sm:$0xff]
  %v1534 = vld [vmem:[%s7 + $0x640] sm:$0xff]
  %v1535 = vld [vmem:[%s7 + $0x648] sm:$0xff]
  %v1536 = vld [vmem:[%s7 + $0x650] sm:$0xff]
  %v1537 = vld [vmem:[%s7 + $0x658] sm:$0xff]
  %v1538 = vld [vmem:[%s7 + $0x660] sm:$0xff]
  %v1539 = vld [vmem:[%s7 + $0x668] sm:$0xff]
  %v1540 = vld [vmem:[%s7 + $0x670] sm:$0xff]
  %v1541 = vld [vmem:[%s7 + $0x678] sm:$0xff]
  %v1542 = vld [vmem:[%s7 + $0x680] sm:$0xff]
  %v1543 = vld [vmem:[%s7 + $0x688] sm:$0xff]
  %v1544 = vld [vmem:[%s7 + $0x690] sm:$0xff]
  %v1545 = vld [vmem:[%s7 + $0x698] sm:$0xff]
  %v1546 = vld [vmem:[%s7 + $0x6a0] sm:$0xff]
  %v1547 = vld [vmem:[%s7 + $0x6a8] sm:$0xff]
  %v1548 = vld [vmem:[%s7 + $0x6b0] sm:$0xff]
  %v1549 = vld [vmem:[%s7 + $0x6b8] sm:$0xff]
  %v1550 = vld [vmem:[%s7 + $0x6c0] sm:$0xff]
  %v1551 = vld [vmem:[%s7 + $0x6c8] sm:$0xff]
  %v1552 = vld [vmem:[%s7 + $0x6d0] sm:$0xff]
  %v1553 = vld [vmem:[%s7 + $0x6d8] sm:$0xff]
  %v1554 = vld [vmem:[%s7 + $0x6e0] sm:$0xff]
  %v1555 = vld [vmem:[%s7 + $0x6e8] sm:$0xff]
  %v1556 = vld [vmem:[%s7 + $0x6f0] sm:$0xff]
  %v1557 = vld [vmem:[%s7 + $0x6f8] sm:$0xff]
  %v1558 = vld [vmem:[%s7 + $0x700] sm:$0xff]
  %v1559 = vld [vmem:[%s7 + $0x708] sm:$0xff]
  %v1560 = vld [vmem:[%s7 + $0x710] sm:$0xff]
  %v1561 = vld [vmem:[%s7 + $0x718] sm:$0xff]
  %v1562 = vld [vmem:[%s7 + $0x720] sm:$0xff]
  %v1563 = vld [vmem:[%s7 + $0x728] sm:$0xff]
  %v1564 = vld [vmem:[%s7 + $0x730] sm:$0xff]
  %v1565 = vld [vmem:[%s7 + $0x738] sm:$0xff]
  %v1566 = vld [vmem:[%s7 + $0x740] sm:$0xff]
  %v1567 = vld [vmem:[%s7 + $0x748] sm:$0xff]
  %v1568 = vld [vmem:[%s7 + $0x750] sm:$0xff]
  %v1569 = vld [vmem:[%s7 + $0x758] sm:$0xff]
  %v1570 = vld [vmem:[%s7 + $0x760] sm:$0xff]
  %v1571 = vld [vmem:[%s7 + $0x768] sm:$0xff]
  %v1572 = vld [vmem:[%s7 + $0x770] sm:$0xff]
  %v1573 = vld [vmem:[%s7 + $0x778] sm:$0xff]
  %v1574 = vld [vmem:[%s7 + $0x780] sm:$0xff]
  %v1575 = vld [vmem:[%s7 + $0x788] sm:$0xff]
  %v1576 = vld [vmem:[%s7 + $0x790] sm:$0xff]
  %v1577 = vld [vmem:[%s7 + $0x798] sm:$0xff]
  %v1578 = vld [vmem:[%s7 + $0x7a0] sm:$0xff]
  %v1579 = vld [vmem:[%s7 + $0x7a8] sm:$0xff]
  %v1580 = vld [vmem:[%s7 + $0x7b0] sm:$0xff]
  %v1581 = vld [vmem:[%s7 + $0x7b8] sm:$0xff]
  %v1582 = vld [vmem:[%s7 + $0x7c0] sm:$0xff]
  %v1583 = vld [vmem:[%s7 + $0x7c8] sm:$0xff]
  %v1584 = vld [vmem:[%s7 + $0x7d0] sm:$0xff]
  %v1585 = vld [vmem:[%s7 + $0x7d8] sm:$0xff]
  %v1586 = vld [vmem:[%s7 + $0x7e0] sm:$0xff]
  %v1587 = vld [vmem:[%s7 + $0x7e8] sm:$0xff]
  %v1588 = vld [vmem:[%s7 + $0x7f0] sm:$0xff]
  %v1589 = vld [vmem:[%s7 + $0x7f8] sm:$0xff]
  %v1590 = vld [vmem:[%s7 + $0x800] sm:$0xff]
  %v1591 = vld [vmem:[%s7 + $0x808] sm:$0xff]
  %v1592 = vld [vmem:[%s7 + $0x810] sm:$0xff]
  %v1593 = vld [vmem:[%s7 + $0x818] sm:$0xff]
  %v1594 = vld [vmem:[%s7 + $0x820] sm:$0xff]
  %v1595 = vld [vmem:[%s7 + $0x828] sm:$0xff]
  %v1596 = vld [vmem:[%s7 + $0x830] sm:$0xff]
  %v1597 = vld [vmem:[%s7 + $0x838] sm:$0xff]
  %v1598 = vld [vmem:[%s7 + $0x840] sm:$0xff]
  %v1599 = vld [vmem:[%s7 + $0x848] sm:$0xff]
  %v1600 = vld [vmem:[%s7 + $0x850] sm:$0xff]
  %v1601 = vld [vmem:[%s7 + $0x858] sm:$0xff]
  %v1602 = vld [vmem:[%s7 + $0x860] sm:$0xff]
  %v1603 = vld [vmem:[%s7 + $0x868] sm:$0xff]
  %v1604 = vld [vmem:[%s7 + $0x870] sm:$0xff]
  %v1605 = vld [vmem:[%s7 + $0x878] sm:$0xff]
  %v1606 = vld [vmem:[%s7 + $0x880] sm:$0xff]
  %v1607 = vld [vmem:[%s7 + $0x888] sm:$0xff]
  %v1608 = vld [vmem:[%s7 + $0x890] sm:$0xff]
  %v1609 = vld [vmem:[%s7 + $0x898] sm:$0xff]
  %v1610 = vld [vmem:[%s7 + $0x8a0] sm:$0xff]
  %v1611 = vld [vmem:[%s7 + $0x8a8] sm:$0xff]
  %v1612 = vld [vmem:[%s7 + $0x8b0] sm:$0xff]
  %v1613 = vld [vmem:[%s7 + $0x8b8] sm:$0xff]
  %v1614 = vld [vmem:[%s7 + $0x8c0] sm:$0xff]
  %v1615 = vld [vmem:[%s7 + $0x8c8] sm:$0xff]
  %v1616 = vld [vmem:[%s7 + $0x8d0] sm:$0xff]
  %v1617 = vld [vmem:[%s7 + $0x8d8] sm:$0xff]
  %v1618 = vld [vmem:[%s7 + $0x8e0] sm:$0xff]
  %v1619 = vld [vmem:[%s7 + $0x8e8] sm:$0xff]
  %v1620 = vld [vmem:[%s7 + $0x8f0] sm:$0xff]
  %v1621 = vld [vmem:[%s7 + $0x8f8] sm:$0xff]
  %v1622 = vld [vmem:[%s7 + $0x900] sm:$0xff]
  %v1623 = vld [vmem:[%s7 + $0x908] sm:$0xff]
  %v1624 = vld [vmem:[%s7 + $0x910] sm:$0xff]
  %v1625 = vld [vmem:[%s7 + $0x918] sm:$0xff]
  %v1626 = vld [vmem:[%s7 + $0x920] sm:$0xff]
  %v1627 = vld [vmem:[%s7 + $0x928] sm:$0xff]
  %v1628 = vld [vmem:[%s7 + $0x930] sm:$0xff]
  %v1629 = vld [vmem:[%s7 + $0x938] sm:$0xff]
  %v1630 = vld [vmem:[%s7 + $0x940] sm:$0xff]
  %v1631 = vld [vmem:[%s7 + $0x948] sm:$0xff]
  %v1632 = vld [vmem:[%s7 + $0x950] sm:$0xff]
  %v1633 = vld [vmem:[%s7 + $0x958] sm:$0xff]
  %v1634 = vld [vmem:[%s7 + $0x960] sm:$0xff]
  %v1635 = vld [vmem:[%s7 + $0x968] sm:$0xff]
  %v1636 = vld [vmem:[%s7 + $0x970] sm:$0xff]
  %v1637 = vld [vmem:[%s7 + $0x978] sm:$0xff]
  %v1638 = vld [vmem:[%s7 + $0x980] sm:$0xff]
  %v1639 = vld [vmem:[%s7 + $0x988] sm:$0xff]
  %v1640 = vld [vmem:[%s7 + $0x990] sm:$0xff]
  %v1641 = vld [vmem:[%s7 + $0x998] sm:$0xff]
  %v1642 = vld [vmem:[%s7 + $0x9a0] sm:$0xff]
  %v1643 = vld [vmem:[%s7 + $0x9a8] sm:$0xff]
  %v1644 = vld [vmem:[%s7 + $0x9b0] sm:$0xff]
  %v1645 = vld [vmem:[%s7 + $0x9b8] sm:$0xff]
  %v1646 = vld [vmem:[%s7 + $0x9c0] sm:$0xff]
  %v1647 = vld [vmem:[%s7 + $0x9c8] sm:$0xff]
  %v1648 = vld [vmem:[%s7 + $0x9d0] sm:$0xff]
  %v1649 = vld [vmem:[%s7 + $0x9d8] sm:$0xff]
  %v1650 = vld [vmem:[%s7 + $0x9e0] sm:$0xff]
  %v1651 = vld [vmem:[%s7 + $0x9e8] sm:$0xff]
  %v1652 = vld [vmem:[%s7 + $0x9f0] sm:$0xff]
  %v1653 = vld [vmem:[%s7 + $0x9f8] sm:$0xff]
  %v1654 = vld [vmem:[%s7 + $0xa00] sm:$0xff]
  %v1655 = vld [vmem:[%s7 + $0xa08] sm:$0xff]
  %v1656 = vld [vmem:[%s7 + $0xa10] sm:$0xff]
  %v1657 = vld [vmem:[%s7 + $0xa18] sm:$0xff]
  %v1658 = vld [vmem:[%s7 + $0xa20] sm:$0xff]
  %v1659 = vld [vmem:[%s7 + $0xa28] sm:$0xff]
  %v1660 = vld [vmem:[%s7 + $0xa30] sm:$0xff]
  %v1661 = vld [vmem:[%s7 + $0xa38] sm:$0xff]
  %v1662 = vld [vmem:[%s7 + $0xa40] sm:$0xff]
  %v1663 = vld [vmem:[%s7 + $0xa48] sm:$0xff]
  %v1664 = vld [vmem:[%s7 + $0xa50] sm:$0xff]
  %v1665 = vld [vmem:[%s7 + $0xa58] sm:$0xff]
  %v1666 = vld [vmem:[%s7 + $0xa60] sm:$0xff]
  %v1667 = vld [vmem:[%s7 + $0xa68] sm:$0xff]
  %v1668 = vld [vmem:[%s7 + $0xa70] sm:$0xff]
  %v1669 = vld [vmem:[%s7 + $0xa78] sm:$0xff]
  %v1670 = vld [vmem:[%s7 + $0xa80] sm:$0xff]
  %v1671 = vld [vmem:[%s7 + $0xa88] sm:$0xff]
  %v1672 = vld [vmem:[%s7 + $0xa90] sm:$0xff]
  %v1673 = vld [vmem:[%s7 + $0xa98] sm:$0xff]
  %v1674 = vld [vmem:[%s7 + $0xaa0] sm:$0xff]
  %v1675 = vld [vmem:[%s7 + $0xaa8] sm:$0xff]
  %v1676 = vld [vmem:[%s7 + $0xab0] sm:$0xff]
  %v1677 = vld [vmem:[%s7 + $0xab8] sm:$0xff]
  %v1678 = vld [vmem:[%s7 + $0xac0] sm:$0xff]
  %v1679 = vld [vmem:[%s7 + $0xac8] sm:$0xff]
  %v1680 = vld [vmem:[%s7 + $0xad0] sm:$0xff]
  %v1681 = vld [vmem:[%s7 + $0xad8] sm:$0xff]
  %v1682 = vld [vmem:[%s7 + $0xae0] sm:$0xff]
  %v1683 = vld [vmem:[%s7 + $0xae8] sm:$0xff]
  %v1684 = vld [vmem:[%s7 + $0xaf0] sm:$0xff]
  %v1685 = vld [vmem:[%s7 + $0xaf8] sm:$0xff]
  %v1686 = vld [vmem:[%s7 + $0xb00] sm:$0xff]
  %v1687 = vld [vmem:[%s7 + $0xb08] sm:$0xff]
  %v1688 = vld [vmem:[%s7 + $0xb10] sm:$0xff]
  %v1689 = vld [vmem:[%s7 + $0xb18] sm:$0xff]
  %v1690 = vld [vmem:[%s7 + $0xb20] sm:$0xff]
  %v1691 = vld [vmem:[%s7 + $0xb28] sm:$0xff]
  %v1692 = vld [vmem:[%s7 + $0xb30] sm:$0xff]
  %v1693 = vld [vmem:[%s7 + $0xb38] sm:$0xff]
  %v1694 = vld [vmem:[%s7 + $0xb40] sm:$0xff]
  %v1695 = vld [vmem:[%s7 + $0xb48] sm:$0xff]
  %v1696 = vld [vmem:[%s7 + $0xb50] sm:$0xff]
  %v1697 = vld [vmem:[%s7 + $0xb58] sm:$0xff]
  %v1698 = vld [vmem:[%s7 + $0xb60] sm:$0xff]
  %v1699 = vld [vmem:[%s7 + $0xb68] sm:$0xff]
  %v1700 = vld [vmem:[%s7 + $0xb70] sm:$0xff]
  %v1701 = vld [vmem:[%s7 + $0xb78] sm:$0xff]
  %v1702 = vld [vmem:[%s7 + $0xb80] sm:$0xff]
  %v1703 = vld [vmem:[%s7 + $0xb88] sm:$0xff]
  %v1704 = vld [vmem:[%s7 + $0xb90] sm:$0xff]
  %v1705 = vld [vmem:[%s7 + $0xb98] sm:$0xff]
  %v1706 = vld [vmem:[%s7 + $0xba0] sm:$0xff]
  %v1707 = vld [vmem:[%s7 + $0xba8] sm:$0xff]
  %v1708 = vld [vmem:[%s7 + $0xbb0] sm:$0xff]
  %v1709 = vld [vmem:[%s7 + $0xbb8] sm:$0xff]
  %v1710 = vld [vmem:[%s7 + $0xbc0] sm:$0xff]
  %v1711 = vld [vmem:[%s7 + $0xbc8] sm:$0xff]
  %v1712 = vld [vmem:[%s7 + $0xbd0] sm:$0xff]
  %v1713 = vld [vmem:[%s7 + $0xbd8] sm:$0xff]
  %v1714 = vld [vmem:[%s7 + $0xbe0] sm:$0xff]
  %v1715 = vld [vmem:[%s7 + $0xbe8] sm:$0xff]
  %v1716 = vld [vmem:[%s7 + $0xbf0] sm:$0xff]
  %v1717 = vld [vmem:[%s7 + $0xbf8] sm:$0xff]
  %v1718 = vld [vmem:[%s7 + $0xc00] sm:$0xff]
  %v1719 = vld [vmem:[%s7 + $0xc08] sm:$0xff]
  %v1720 = vld [vmem:[%s7 + $0xc10] sm:$0xff]
  %v1721 = vld [vmem:[%s7 + $0xc18] sm:$0xff]
  %v1722 = vld [vmem:[%s7 + $0xc20] sm:$0xff]
  %v1723 = vld [vmem:[%s7 + $0xc28] sm:$0xff]
  %v1724 = vld [vmem:[%s7 + $0xc30] sm:$0xff]
  %v1725 = vld [vmem:[%s7 + $0xc38] sm:$0xff]
  %v1726 = vld [vmem:[%s7 + $0xc40] sm:$0xff]
  %v1727 = vld [vmem:[%s7 + $0xc48] sm:$0xff]
  %v1728 = vld [vmem:[%s7 + $0xc50] sm:$0xff]
  %v1729 = vld [vmem:[%s7 + $0xc58] sm:$0xff]
  %v1730 = vld [vmem:[%s7 + $0xc60] sm:$0xff]
  %v1731 = vld [vmem:[%s7 + $0xc68] sm:$0xff]
  %v1732 = vld [vmem:[%s7 + $0xc70] sm:$0xff]
  %v1733 = vld [vmem:[%s7 + $0xc78] sm:$0xff]
  %v1734 = vld [vmem:[%s7 + $0xc80] sm:$0xff]
  %v1735 = vld [vmem:[%s7 + $0xc88] sm:$0xff]
  %v1736 = vld [vmem:[%s7 + $0xc90] sm:$0xff]
  %v1737 = vld [vmem:[%s7 + $0xc98] sm:$0xff]
  %v1738 = vld [vmem:[%s7 + $0xca0] sm:$0xff]
  %v1739 = vld [vmem:[%s7 + $0xca8] sm:$0xff]
  %v1740 = vld [vmem:[%s7 + $0xcb0] sm:$0xff]
  %v1741 = vld [vmem:[%s7 + $0xcb8] sm:$0xff]
  %v1742 = vld [vmem:[%s7 + $0xcc0] sm:$0xff]
  %v1743 = vld [vmem:[%s7 + $0xcc8] sm:$0xff]
  %v1744 = vld [vmem:[%s7 + $0xcd0] sm:$0xff]
  %v1745 = vld [vmem:[%s7 + $0xcd8] sm:$0xff]
  %v1746 = vld [vmem:[%s7 + $0xce0] sm:$0xff]
  %v1747 = vld [vmem:[%s7 + $0xce8] sm:$0xff]
  %v1748 = vld [vmem:[%s7 + $0xcf0] sm:$0xff]
  %v1749 = vld [vmem:[%s7 + $0xcf8] sm:$0xff]
  %v1750 = vld [vmem:[%s7 + $0xd00] sm:$0xff]
  %v1751 = vld [vmem:[%s7 + $0xd08] sm:$0xff]
  %v1752 = vld [vmem:[%s7 + $0xd10] sm:$0xff]
  %v1753 = vld [vmem:[%s7 + $0xd18] sm:$0xff]
  %v1754 = vld [vmem:[%s7 + $0xd20] sm:$0xff]
  %v1755 = vld [vmem:[%s7 + $0xd28] sm:$0xff]
  %v1756 = vld [vmem:[%s7 + $0xd30] sm:$0xff]
  %v1757 = vld [vmem:[%s7 + $0xd38] sm:$0xff]
  %v1758 = vld [vmem:[%s7 + $0xd40] sm:$0xff]
  %v1759 = vld [vmem:[%s7 + $0xd48] sm:$0xff]
  %v1760 = vld [vmem:[%s7 + $0xd50] sm:$0xff]
  %v1761 = vld [vmem:[%s7 + $0xd58] sm:$0xff]
  %v1762 = vld [vmem:[%s7 + $0xd60] sm:$0xff]
  %v1763 = vld [vmem:[%s7 + $0xd68] sm:$0xff]
  %v1764 = vld [vmem:[%s7 + $0xd70] sm:$0xff]
  %v1765 = vld [vmem:[%s7 + $0xd78] sm:$0xff]
  %v1766 = vld [vmem:[%s7 + $0xd80] sm:$0xff]
  %v1767 = vld [vmem:[%s7 + $0xd88] sm:$0xff]
  %v1768 = vld [vmem:[%s7 + $0xd90] sm:$0xff]
  %v1769 = vld [vmem:[%s7 + $0xd98] sm:$0xff]
  %v1770 = vld [vmem:[%s7 + $0xda0] sm:$0xff]
  %v1771 = vld [vmem:[%s7 + $0xda8] sm:$0xff]
  %v1772 = vld [vmem:[%s7 + $0xdb0] sm:$0xff]
  %v1773 = vld [vmem:[%s7 + $0xdb8] sm:$0xff]
  %v1774 = vld [vmem:[%s7 + $0xdc0] sm:$0xff]
  %v1775 = vld [vmem:[%s7 + $0xdc8] sm:$0xff]
  %v1776 = vld [vmem:[%s7 + $0xdd0] sm:$0xff]
  %v1777 = vld [vmem:[%s7 + $0xdd8] sm:$0xff]
  %v1778 = vld [vmem:[%s7 + $0xde0] sm:$0xff]
  %v1779 = vld [vmem:[%s7 + $0xde8] sm:$0xff]
  %v1780 = vld [vmem:[%s7 + $0xdf0] sm:$0xff]
  %v1781 = vld [vmem:[%s7 + $0xdf8] sm:$0xff]
  %v1782 = vld [vmem:[%s7 + $0xe00] sm:$0xff]
  %v1783 = vld [vmem:[%s7 + $0xe08] sm:$0xff]
  %v1784 = vld [vmem:[%s7 + $0xe10] sm:$0xff]
  %v1785 = vld [vmem:[%s7 + $0xe18] sm:$0xff]
  %v1786 = vld [vmem:[%s7 + $0xe20] sm:$0xff]
  %v1787 = vld [vmem:[%s7 + $0xe28] sm:$0xff]
  %v1788 = vld [vmem:[%s7 + $0xe30] sm:$0xff]
  %v1789 = vld [vmem:[%s7 + $0xe38] sm:$0xff]
  %v1790 = vld [vmem:[%s7 + $0xe40] sm:$0xff]
  %v1791 = vld [vmem:[%s7 + $0xe48] sm:$0xff]
  %v1792 = vld [vmem:[%s7 + $0xe50] sm:$0xff]
  %v1793 = vld [vmem:[%s7 + $0xe58] sm:$0xff]
  %v1794 = vld [vmem:[%s7 + $0xe60] sm:$0xff]
  %v1795 = vld [vmem:[%s7 + $0xe68] sm:$0xff]
  %v1796 = vld [vmem:[%s7 + $0xe70] sm:$0xff]
  %v1797 = vld [vmem:[%s7 + $0xe78] sm:$0xff]
  %v1798 = vld [vmem:[%s7 + $0xe80] sm:$0xff]
  %v1799 = vld [vmem:[%s7 + $0xe88] sm:$0xff]
  %v1800 = vld [vmem:[%s7 + $0xe90] sm:$0xff]
  %v1801 = vld [vmem:[%s7 + $0xe98] sm:$0xff]
  %v1802 = vld [vmem:[%s7 + $0xea0] sm:$0xff]
  %v1803 = vld [vmem:[%s7 + $0xea8] sm:$0xff]
  %v1804 = vld [vmem:[%s7 + $0xeb0] sm:$0xff]
  %v1805 = vld [vmem:[%s7 + $0xeb8] sm:$0xff]
  %v1806 = vld [vmem:[%s7 + $0xec0] sm:$0xff]
  %v1807 = vld [vmem:[%s7 + $0xec8] sm:$0xff]
  %v1808 = vld [vmem:[%s7 + $0xed0] sm:$0xff]
  %v1809 = vld [vmem:[%s7 + $0xed8] sm:$0xff]
  %v1810 = vld [vmem:[%s7 + $0xee0] sm:$0xff]
  %v1811 = vld [vmem:[%s7 + $0xee8] sm:$0xff]
  %v1812 = vld [vmem:[%s7 + $0xef0] sm:$0xff]
  %v1813 = vld [vmem:[%s7 + $0xef8] sm:$0xff]
  %v1814 = vld [vmem:[%s8] sm:$0xff]
  %v1815 = vld [vmem:[%s8 + $0x8] sm:$0xff]
  %v1818 = vlaneseq
  %v1819 = vshrl.u32 %v1818, 7
  %v1820 = vsub.s32 0, %v1819
  %v1821 = vrot.slane %v1814, %v1820
  %v1822 = vlaneseq
  %v1823 = vshrl.u32 %v1822, 7
  %v1824 = vsub.s32 1, %v1823
  %v1825 = vrot.slane %v1814, %v1824
  %v1826 = vlaneseq
  %v1827 = vshrl.u32 %v1826, 7
  %v1828 = vsub.s32 2, %v1827
  %v1829 = vrot.slane %v1814, %v1828
  %v1830 = vlaneseq
  %v1831 = vshrl.u32 %v1830, 7
  %v1832 = vsub.s32 3, %v1831
  %v1833 = vrot.slane %v1814, %v1832
  %v1834 = vlaneseq
  %v1835 = vshrl.u32 %v1834, 7
  %v1836 = vsub.s32 4, %v1835
  %v1837 = vrot.slane %v1814, %v1836
  %v1838 = vlaneseq
  %v1839 = vshrl.u32 %v1838, 7
  %v1840 = vsub.s32 5, %v1839
  %v1841 = vrot.slane %v1814, %v1840
  %v1842 = vlaneseq
  %v1843 = vshrl.u32 %v1842, 7
  %v1844 = vsub.s32 6, %v1843
  %v1845 = vrot.slane %v1814, %v1844
  %v1846 = vlaneseq
  %v1847 = vshrl.u32 %v1846, 7
  %v1848 = vsub.s32 7, %v1847
  %v1849 = vrot.slane %v1814, %v1848
  %v1850 = vlaneseq
  %v1851 = vshrl.u32 %v1850, 7
  %v1852 = vsub.s32 0, %v1851
  %v1853 = vrot.slane %v1815, %v1852
  %v1854 = vlaneseq
  %v1855 = vshrl.u32 %v1854, 7
  %v1856 = vsub.s32 1, %v1855
  %v1857 = vrot.slane %v1815, %v1856
  %v1858 = vlaneseq
  %v1859 = vshrl.u32 %v1858, 7
  %v1860 = vsub.s32 2, %v1859
  %v1861 = vrot.slane %v1815, %v1860
  %v1862 = vlaneseq
  %v1863 = vshrl.u32 %v1862, 7
  %v1864 = vsub.s32 3, %v1863
  %v1865 = vrot.slane %v1815, %v1864
  %v1866 = vlaneseq
  %v1867 = vshrl.u32 %v1866, 7
  %v1868 = vsub.s32 4, %v1867
  %v1869 = vrot.slane %v1815, %v1868
  %v1870 = vlaneseq
  %v1871 = vshrl.u32 %v1870, 7
  %v1872 = vsub.s32 5, %v1871
  %v1873 = vrot.slane %v1815, %v1872
  %v1874 = vlaneseq
  %v1875 = vshrl.u32 %v1874, 7
  %v1876 = vsub.s32 6, %v1875
  %v1877 = vrot.slane %v1815, %v1876
  %1893 = vmatprep.subr.mxu0 %v1335
  %1894 = vmatpush1.msra.mxu0 %v1334
  %1895 = vmatprep.subr.mxu0 %v1350
  %1896 = vmatpush1.msra.mxu0 %v1349
  %1897 = vmatprep.subr.mxu0 %v1365
  %1898 = vmatpush1.msra.mxu0 %v1364
  %1899 = vmatprep.subr.mxu0 %v1380
  %1900 = vmatpush1.msra.mxu0 %v1379
  %1901 = vmatprep.subr.mxu0 %v1395
  %1902 = vmatpush1.msra.mxu0 %v1394
  %1903 = vmatprep.subr.mxu0 %v1410
  %1904 = vmatpush1.msra.mxu0 %v1409
  %1905 = vmatprep.subr.mxu0 %v1425
  %1906 = vmatpush1.msra.mxu0 %v1424
  %1907 = vmatprep.subr.mxu0 %v1440
  %1908 = vmatpush1.msra.mxu0 %v1439
  %1909 = vmatprep.subr.mxu0 %v1455
  %1910 = vmatpush1.msra.mxu0 %v1454
  %1911 = vmatprep.subr.mxu0 %v1470
  %1912 = vmatpush1.msra.mxu0 %v1469
  %1913 = vmatprep.subr.mxu0 %v1485
  %1914 = vmatpush1.msra.mxu0 %v1484
  %1915 = vmatprep.subr.mxu0 %v1500
  %1916 = vmatpush1.msra.mxu0 %v1499
  %1917 = vmatprep.subr.mxu0 %v1515
  %1918 = vmatpush1.msra.mxu0 %v1514
  %1919 = vmatprep.subr.mxu0 %v1530
  %1920 = vmatpush1.msra.mxu0 %v1529
  %1921 = vmatprep.subr.mxu0 %v1545
  %1922 = vmatpush1.msra.mxu0 %v1544
  %1923 = vmatprep.subr.mxu0 %v1560
  %1924 = vmatpush1.msra.mxu0 %v1559
  %1925 = vmatprep.subr.mxu0 %v1575
  %1926 = vmatpush1.msra.mxu0 %v1574
  %1927 = vmatprep.subr.mxu0 %v1590
  %1928 = vmatpush1.msra.mxu0 %v1589
  %1929 = vmatprep.subr.mxu0 %v1605
  %1930 = vmatpush1.msra.mxu0 %v1604
  %1931 = vmatprep.subr.mxu0 %v1620
  %1932 = vmatpush1.msra.mxu0 %v1619
  %1933 = vmatprep.subr.mxu0 %v1635
  %1934 = vmatpush1.msra.mxu0 %v1634
  %1935 = vmatprep.subr.mxu0 %v1650
  %1936 = vmatpush1.msra.mxu0 %v1649
  %1937 = vmatprep.subr.mxu0 %v1665
  %1938 = vmatpush1.msra.mxu0 %v1664
  %1939 = vmatprep.subr.mxu0 %v1680
  %1940 = vmatpush1.msra.mxu0 %v1679
  %1941 = vmatprep.subr.mxu0 %v1695
  %1942 = vmatpush1.msra.mxu0 %v1694
  %1943 = vmatprep.subr.mxu0 %v1710
  %1944 = vmatpush1.msra.mxu0 %v1709
  %1945 = vmatprep.subr.mxu0 %v1725
  %1946 = vmatpush1.msra.mxu0 %v1724
  %1947 = vmatprep.subr.mxu0 %v1740
  %1948 = vmatpush1.msra.mxu0 %v1739
  %1949 = vmatprep.subr.mxu0 %v1755
  %1950 = vmatpush1.msra.mxu0 %v1754
  %1951 = vmatprep.subr.mxu0 %v1770
  %1952 = vmatpush1.msra.mxu0 %v1769
  %1953 = vmatprep.subr.mxu0 %v1785
  %1954 = vmatpush1.msra.mxu0 %v1784
  %1955 = vmatprep.subr.mxu0 %v1800
  %1956 = vmatpush1.msra.mxu0 %v1799
  %1957 = vmatprep.mubr.f32.mxu0 %v1332
  %1958 = vmatmul.mubr.f32.gmra.mrb[0].mxu0 %v1330
  %v1959 = vpop.f32.mrb[0].mxu0
  %v1960 = vadd.f32 %v1821, %v1959
  %v1961 = vpop.f32.mrb[0].mxu0
  %v1962 = vadd.f32 %v1825, %v1961
  %1963 = vdwg.mxu0
  %1964 = vmatprep.subr.mxu0 %v1337
  %1965 = vmatpush1.msra.mxu0 %v1336
  %1966 = vmatprep.subr.mxu0 %v1352
  %1967 = vmatpush1.msra.mxu0 %v1351
  %1968 = vmatprep.subr.mxu0 %v1367
  %1969 = vmatpush1.msra.mxu0 %v1366
  %1970 = vmatprep.subr.mxu0 %v1382
  %1971 = vmatpush1.msra.mxu0 %v1381
  %1972 = vmatprep.subr.mxu0 %v1397
  %1973 = vmatpush1.msra.mxu0 %v1396
  %1974 = vmatprep.subr.mxu0 %v1412
  %1975 = vmatpush1.msra.mxu0 %v1411
  %1976 = vmatprep.subr.mxu0 %v1427
  %1977 = vmatpush1.msra.mxu0 %v1426
  %1978 = vmatprep.subr.mxu0 %v1442
  %1979 = vmatpush1.msra.mxu0 %v1441
  %1980 = vmatprep.subr.mxu0 %v1457
  %1981 = vmatpush1.msra.mxu0 %v1456
  %1982 = vmatprep.subr.mxu0 %v1472
  %1983 = vmatpush1.msra.mxu0 %v1471
  %1984 = vmatprep.subr.mxu0 %v1487
  %1985 = vmatpush1.msra.mxu0 %v1486
  %1986 = vmatprep.subr.mxu0 %v1502
  %1987 = vmatpush1.msra.mxu0 %v1501
  %1988 = vmatprep.subr.mxu0 %v1517
  %1989 = vmatpush1.msra.mxu0 %v1516
  %1990 = vmatprep.subr.mxu0 %v1532
  %1991 = vmatpush1.msra.mxu0 %v1531
  %1992 = vmatprep.subr.mxu0 %v1547
  %1993 = vmatpush1.msra.mxu0 %v1546
  %1994 = vmatprep.subr.mxu0 %v1562
  %1995 = vmatpush1.msra.mxu0 %v1561
  %1996 = vmatprep.subr.mxu0 %v1577
  %1997 = vmatpush1.msra.mxu0 %v1576
  %1998 = vmatprep.subr.mxu0 %v1592
  %1999 = vmatpush1.msra.mxu0 %v1591
  %2000 = vmatprep.subr.mxu0 %v1607
  %2001 = vmatpush1.msra.mxu0 %v1606
  %2002 = vmatprep.subr.mxu0 %v1622
  %2003 = vmatpush1.msra.mxu0 %v1621
  %2004 = vmatprep.subr.mxu0 %v1637
  %2005 = vmatpush1.msra.mxu0 %v1636
  %2006 = vmatprep.subr.mxu0 %v1652
  %2007 = vmatpush1.msra.mxu0 %v1651
  %2008 = vmatprep.subr.mxu0 %v1667
  %2009 = vmatpush1.msra.mxu0 %v1666
  %2010 = vmatprep.subr.mxu0 %v1682
  %2011 = vmatpush1.msra.mxu0 %v1681
  %2012 = vmatprep.subr.mxu0 %v1697
  %2013 = vmatpush1.msra.mxu0 %v1696
  %2014 = vmatprep.subr.mxu0 %v1712
  %2015 = vmatpush1.msra.mxu0 %v1711
  %2016 = vmatprep.subr.mxu0 %v1727
  %2017 = vmatpush1.msra.mxu0 %v1726
  %2018 = vmatprep.subr.mxu0 %v1742
  %2019 = vmatpush1.msra.mxu0 %v1741
  %2020 = vmatprep.subr.mxu0 %v1757
  %2021 = vmatpush1.msra.mxu0 %v1756
  %2022 = vmatprep.subr.mxu0 %v1772
  %2023 = vmatpush1.msra.mxu0 %v1771
  %2024 = vmatprep.subr.mxu0 %v1787
  %2025 = vmatpush1.msra.mxu0 %v1786
  %2026 = vmatprep.subr.mxu0 %v1802
  %2027 = vmatpush1.msra.mxu0 %v1801
  %2028 = vmatprep.mubr.f32.mxu0 %v1332
  %2029 = vmatmul.mubr.f32.gmra.mrb[0].mxu0 %v1330
  %v2030 = vpop.f32.mrb[0].mxu0
  %v2031 = vadd.f32 %v1829, %v2030
  %v2032 = vpop.f32.mrb[0].mxu0
  %v2033 = vadd.f32 %v1833, %v2032
  %2034 = vdwg.mxu0
  %2035 = vmatprep.subr.mxu0 %v1339
  %2036 = vmatpush1.msra.mxu0 %v1338
  %2037 = vmatprep.subr.mxu0 %v1354
  %2038 = vmatpush1.msra.mxu0 %v1353
  %2039 = vmatprep.subr.mxu0 %v1369
  %2040 = vmatpush1.msra.mxu0 %v1368
  %2041 = vmatprep.subr.mxu0 %v1384
  %2042 = vmatpush1.msra.mxu0 %v1383
  %2043 = vmatprep.subr.mxu0 %v1399
  %2044 = vmatpush1.msra.mxu0 %v1398
  %2045 = vmatprep.subr.mxu0 %v1414
  %2046 = vmatpush1.msra.mxu0 %v1413
  %2047 = vmatprep.subr.mxu0 %v1429
  %2048 = vmatpush1.msra.mxu0 %v1428
  %2049 = vmatprep.subr.mxu0 %v1444
  %2050 = vmatpush1.msra.mxu0 %v1443
  %2051 = vmatprep.subr.mxu0 %v1459
  %2052 = vmatpush1.msra.mxu0 %v1458
  %2053 = vmatprep.subr.mxu0 %v1474
  %2054 = vmatpush1.msra.mxu0 %v1473
  %2055 = vmatprep.subr.mxu0 %v1489
  %2056 = vmatpush1.msra.mxu0 %v1488
  %2057 = vmatprep.subr.mxu0 %v1504
  %2058 = vmatpush1.msra.mxu0 %v1503
  %2059 = vmatprep.subr.mxu0 %v1519
  %2060 = vmatpush1.msra.mxu0 %v1518
  %2061 = vmatprep.subr.mxu0 %v1534
  %2062 = vmatpush1.msra.mxu0 %v1533
  %2063 = vmatprep.subr.mxu0 %v1549
  %2064 = vmatpush1.msra.mxu0 %v1548
  %2065 = vmatprep.subr.mxu0 %v1564
  %2066 = vmatpush1.msra.mxu0 %v1563
  %2067 = vmatprep.subr.mxu0 %v1579
  %2068 = vmatpush1.msra.mxu0 %v1578
  %2069 = vmatprep.subr.mxu0 %v1594
  %2070 = vmatpush1.msra.mxu0 %v1593
  %2071 = vmatprep.subr.mxu0 %v1609
  %2072 = vmatpush1.msra.mxu0 %v1608
  %2073 = vmatprep.subr.mxu0 %v1624
  %2074 = vmatpush1.msra.mxu0 %v1623
  %2075 = vmatprep.subr.mxu0 %v1639
  %2076 = vmatpush1.msra.mxu0 %v1638
  %2077 = vmatprep.subr.mxu0 %v1654
  %2078 = vmatpush1.msra.mxu0 %v1653
  %2079 = vmatprep.subr.mxu0 %v1669
  %2080 = vmatpush1.msra.mxu0 %v1668
  %2081 = vmatprep.subr.mxu0 %v1684
  %2082 = vmatpush1.msra.mxu0 %v1683
  %2083 = vmatprep.subr.mxu0 %v1699
  %2084 = vmatpush1.msra.mxu0 %v1698
  %2085 = vmatprep.subr.mxu0 %v1714
  %2086 = vmatpush1.msra.mxu0 %v1713
  %2087 = vmatprep.subr.mxu0 %v1729
  %2088 = vmatpush1.msra.mxu0 %v1728
  %2089 = vmatprep.subr.mxu0 %v1744
  %2090 = vmatpush1.msra.mxu0 %v1743
  %2091 = vmatprep.subr.mxu0 %v1759
  %2092 = vmatpush1.msra.mxu0 %v1758
  %2093 = vmatprep.subr.mxu0 %v1774
  %2094 = vmatpush1.msra.mxu0 %v1773
  %2095 = vmatprep.subr.mxu0 %v1789
  %2096 = vmatpush1.msra.mxu0 %v1788
  %2097 = vmatprep.subr.mxu0 %v1804
  %2098 = vmatpush1.msra.mxu0 %v1803
  %2099 = vmatprep.mubr.f32.mxu0 %v1332
  %2100 = vmatmul.mubr.f32.gmra.mrb[0].mxu0 %v1330
  %v2101 = vpop.f32.mrb[0].mxu0
  %v2102 = vadd.f32 %v1837, %v2101
  %v2103 = vpop.f32.mrb[0].mxu0
  %v2104 = vadd.f32 %v1841, %v2103
  %2105 = vdwg.mxu0
  %2106 = vmatprep.subr.mxu0 %v1341
  %2107 = vmatpush1.msra.mxu0 %v1340
  %2108 = vmatprep.subr.mxu0 %v1356
  %2109 = vmatpush1.msra.mxu0 %v1355
  %2110 = vmatprep.subr.mxu0 %v1371
  %2111 = vmatpush1.msra.mxu0 %v1370
  %2112 = vmatprep.subr.mxu0 %v1386
  %2113 = vmatpush1.msra.mxu0 %v1385
  %2114 = vmatprep.subr.mxu0 %v1401
  %2115 = vmatpush1.msra.mxu0 %v1400
  %2116 = vmatprep.subr.mxu0 %v1416
  %2117 = vmatpush1.msra.mxu0 %v1415
  %2118 = vmatprep.subr.mxu0 %v1431
  %2119 = vmatpush1.msra.mxu0 %v1430
  %2120 = vmatprep.subr.mxu0 %v1446
  %2121 = vmatpush1.msra.mxu0 %v1445
  %2122 = vmatprep.subr.mxu0 %v1461
  %2123 = vmatpush1.msra.mxu0 %v1460
  %2124 = vmatprep.subr.mxu0 %v1476
  %2125 = vmatpush1.msra.mxu0 %v1475
  %2126 = vmatprep.subr.mxu0 %v1491
  %2127 = vmatpush1.msra.mxu0 %v1490
  %2128 = vmatprep.subr.mxu0 %v1506
  %2129 = vmatpush1.msra.mxu0 %v1505
  %2130 = vmatprep.subr.mxu0 %v1521
  %2131 = vmatpush1.msra.mxu0 %v1520
  %2132 = vmatprep.subr.mxu0 %v1536
  %2133 = vmatpush1.msra.mxu0 %v1535
  %2134 = vmatprep.subr.mxu0 %v1551
  %2135 = vmatpush1.msra.mxu0 %v1550
  %2136 = vmatprep.subr.mxu0 %v1566
  %2137 = vmatpush1.msra.mxu0 %v1565
  %2138 = vmatprep.subr.mxu0 %v1581
  %2139 = vmatpush1.msra.mxu0 %v1580
  %2140 = vmatprep.subr.mxu0 %v1596
  %2141 = vmatpush1.msra.mxu0 %v1595
  %2142 = vmatprep.subr.mxu0 %v1611
  %2143 = vmatpush1.msra.mxu0 %v1610
  %2144 = vmatprep.subr.mxu0 %v1626
  %2145 = vmatpush1.msra.mxu0 %v1625
  %2146 = vmatprep.subr.mxu0 %v1641
  %2147 = vmatpush1.msra.mxu0 %v1640
  %2148 = vmatprep.subr.mxu0 %v1656
  %2149 = vmatpush1.msra.mxu0 %v1655
  %2150 = vmatprep.subr.mxu0 %v1671
  %2151 = vmatpush1.msra.mxu0 %v1670
  %2152 = vmatprep.subr.mxu0 %v1686
  %2153 = vmatpush1.msra.mxu0 %v1685
  %2154 = vmatprep.subr.mxu0 %v1701
  %2155 = vmatpush1.msra.mxu0 %v1700
  %2156 = vmatprep.subr.mxu0 %v1716
  %2157 = vmatpush1.msra.mxu0 %v1715
  %2158 = vmatprep.subr.mxu0 %v1731
  %2159 = vmatpush1.msra.mxu0 %v1730
  %2160 = vmatprep.subr.mxu0 %v1746
  %2161 = vmatpush1.msra.mxu0 %v1745
  %2162 = vmatprep.subr.mxu0 %v1761
  %2163 = vmatpush1.msra.mxu0 %v1760
  %2164 = vmatprep.subr.mxu0 %v1776
  %2165 = vmatpush1.msra.mxu0 %v1775
  %2166 = vmatprep.subr.mxu0 %v1791
  %2167 = vmatpush1.msra.mxu0 %v1790
  %2168 = vmatprep.subr.mxu0 %v1806
  %2169 = vmatpush1.msra.mxu0 %v1805
  %2170 = vmatprep.mubr.f32.mxu0 %v1332
  %2171 = vmatmul.mubr.f32.gmra.mrb[0].mxu0 %v1330
  %v2172 = vpop.f32.mrb[0].mxu0
  %v2173 = vadd.f32 %v1845, %v2172
  %v2174 = vpop.f32.mrb[0].mxu0
  %v2175 = vadd.f32 %v1849, %v2174
  %2176 = vdwg.mxu0
  %2177 = vmatprep.subr.mxu0 %v1343
  %2178 = vmatpush1.msra.mxu0 %v1342
  %2179 = vmatprep.subr.mxu0 %v1358
  %2180 = vmatpush1.msra.mxu0 %v1357
  %2181 = vmatprep.subr.mxu0 %v1373
  %2182 = vmatpush1.msra.mxu0 %v1372
  %2183 = vmatprep.subr.mxu0 %v1388
  %2184 = vmatpush1.msra.mxu0 %v1387
  %2185 = vmatprep.subr.mxu0 %v1403
  %2186 = vmatpush1.msra.mxu0 %v1402
  %2187 = vmatprep.subr.mxu0 %v1418
  %2188 = vmatpush1.msra.mxu0 %v1417
  %2189 = vmatprep.subr.mxu0 %v1433
  %2190 = vmatpush1.msra.mxu0 %v1432
  %2191 = vmatprep.subr.mxu0 %v1448
  %2192 = vmatpush1.msra.mxu0 %v1447
  %2193 = vmatprep.subr.mxu0 %v1463
  %2194 = vmatpush1.msra.mxu0 %v1462
  %2195 = vmatprep.subr.mxu0 %v1478
  %2196 = vmatpush1.msra.mxu0 %v1477
  %2197 = vmatprep.subr.mxu0 %v1493
  %2198 = vmatpush1.msra.mxu0 %v1492
  %2199 = vmatprep.subr.mxu0 %v1508
  %2200 = vmatpush1.msra.mxu0 %v1507
  %2201 = vmatprep.subr.mxu0 %v1523
  %2202 = vmatpush1.msra.mxu0 %v1522
  %2203 = vmatprep.subr.mxu0 %v1538
  %2204 = vmatpush1.msra.mxu0 %v1537
  %2205 = vmatprep.subr.mxu0 %v1553
  %2206 = vmatpush1.msra.mxu0 %v1552
  %2207 = vmatprep.subr.mxu0 %v1568
  %2208 = vmatpush1.msra.mxu0 %v1567
  %2209 = vmatprep.subr.mxu0 %v1583
  %2210 = vmatpush1.msra.mxu0 %v1582
  %2211 = vmatprep.subr.mxu0 %v1598
  %2212 = vmatpush1.msra.mxu0 %v1597
  %2213 = vmatprep.subr.mxu0 %v1613
  %2214 = vmatpush1.msra.mxu0 %v1612
  %2215 = vmatprep.subr.mxu0 %v1628
  %2216 = vmatpush1.msra.mxu0 %v1627
  %2217 = vmatprep.subr.mxu0 %v1643
  %2218 = vmatpush1.msra.mxu0 %v1642
  %2219 = vmatprep.subr.mxu0 %v1658
  %2220 = vmatpush1.msra.mxu0 %v1657
  %2221 = vmatprep.subr.mxu0 %v1673
  %2222 = vmatpush1.msra.mxu0 %v1672
  %2223 = vmatprep.subr.mxu0 %v1688
  %2224 = vmatpush1.msra.mxu0 %v1687
  %2225 = vmatprep.subr.mxu0 %v1703
  %2226 = vmatpush1.msra.mxu0 %v1702
  %2227 = vmatprep.subr.mxu0 %v1718
  %2228 = vmatpush1.msra.mxu0 %v1717
  %2229 = vmatprep.subr.mxu0 %v1733
  %2230 = vmatpush1.msra.mxu0 %v1732
  %2231 = vmatprep.subr.mxu0 %v1748
  %2232 = vmatpush1.msra.mxu0 %v1747
  %2233 = vmatprep.subr.mxu0 %v1763
  %2234 = vmatpush1.msra.mxu0 %v1762
  %2235 = vmatprep.subr.mxu0 %v1778
  %2236 = vmatpush1.msra.mxu0 %v1777
  %2237 = vmatprep.subr.mxu0 %v1793
  %2238 = vmatpush1.msra.mxu0 %v1792
  %2239 = vmatprep.subr.mxu0 %v1808
  %2240 = vmatpush1.msra.mxu0 %v1807
  %2241 = vmatprep.mubr.f32.mxu0 %v1332
  %2242 = vmatmul.mubr.f32.gmra.mrb[0].mxu0 %v1330
  %v2243 = vpop.f32.mrb[0].mxu0
  %v2244 = vadd.f32 %v1853, %v2243
  %v2245 = vpop.f32.mrb[0].mxu0
  %v2246 = vadd.f32 %v1857, %v2245
  %2247 = vdwg.mxu0
  %2248 = vmatprep.subr.mxu0 %v1345
  %2249 = vmatpush1.msra.mxu0 %v1344
  %2250 = vmatprep.subr.mxu0 %v1360
  %2251 = vmatpush1.msra.mxu0 %v1359
  %2252 = vmatprep.subr.mxu0 %v1375
  %2253 = vmatpush1.msra.mxu0 %v1374
  %2254 = vmatprep.subr.mxu0 %v1390
  %2255 = vmatpush1.msra.mxu0 %v1389
  %2256 = vmatprep.subr.mxu0 %v1405
  %2257 = vmatpush1.msra.mxu0 %v1404
  %2258 = vmatprep.subr.mxu0 %v1420
  %2259 = vmatpush1.msra.mxu0 %v1419
  %2260 = vmatprep.subr.mxu0 %v1435
  %2261 = vmatpush1.msra.mxu0 %v1434
  %2262 = vmatprep.subr.mxu0 %v1450
  %2263 = vmatpush1.msra.mxu0 %v1449
  %2264 = vmatprep.subr.mxu0 %v1465
  %2265 = vmatpush1.msra.mxu0 %v1464
  %2266 = vmatprep.subr.mxu0 %v1480
  %2267 = vmatpush1.msra.mxu0 %v1479
  %2268 = vmatprep.subr.mxu0 %v1495
  %2269 = vmatpush1.msra.mxu0 %v1494
  %2270 = vmatprep.subr.mxu0 %v1510
  %2271 = vmatpush1.msra.mxu0 %v1509
  %2272 = vmatprep.subr.mxu0 %v1525
  %2273 = vmatpush1.msra.mxu0 %v1524
  %2274 = vmatprep.subr.mxu0 %v1540
  %2275 = vmatpush1.msra.mxu0 %v1539
  %2276 = vmatprep.subr.mxu0 %v1555
  %2277 = vmatpush1.msra.mxu0 %v1554
  %2278 = vmatprep.subr.mxu0 %v1570
  %2279 = vmatpush1.msra.mxu0 %v1569
  %2280 = vmatprep.subr.mxu0 %v1585
  %2281 = vmatpush1.msra.mxu0 %v1584
  %2282 = vmatprep.subr.mxu0 %v1600
  %2283 = vmatpush1.msra.mxu0 %v1599
  %2284 = vmatprep.subr.mxu0 %v1615
  %2285 = vmatpush1.msra.mxu0 %v1614
  %2286 = vmatprep.subr.mxu0 %v1630
  %2287 = vmatpush1.msra.mxu0 %v1629
  %2288 = vmatprep.subr.mxu0 %v1645
  %2289 = vmatpush1.msra.mxu0 %v1644
  %2290 = vmatprep.subr.mxu0 %v1660
  %2291 = vmatpush1.msra.mxu0 %v1659
  %2292 = vmatprep.subr.mxu0 %v1675
  %2293 = vmatpush1.msra.mxu0 %v1674
  %2294 = vmatprep.subr.mxu0 %v1690
  %2295 = vmatpush1.msra.mxu0 %v1689
  %2296 = vmatprep.subr.mxu0 %v1705
  %2297 = vmatpush1.msra.mxu0 %v1704
  %2298 = vmatprep.subr.mxu0 %v1720
  %2299 = vmatpush1.msra.mxu0 %v1719
  %2300 = vmatprep.subr.mxu0 %v1735
  %2301 = vmatpush1.msra.mxu0 %v1734
  %2302 = vmatprep.subr.mxu0 %v1750
  %2303 = vmatpush1.msra.mxu0 %v1749
  %2304 = vmatprep.subr.mxu0 %v1765
  %2305 = vmatpush1.msra.mxu0 %v1764
  %2306 = vmatprep.subr.mxu0 %v1780
  %2307 = vmatpush1.msra.mxu0 %v1779
  %2308 = vmatprep.subr.mxu0 %v1795
  %2309 = vmatpush1.msra.mxu0 %v1794
  %2310 = vmatprep.subr.mxu0 %v1810
  %2311 = vmatpush1.msra.mxu0 %v1809
  %2312 = vmatprep.mubr.f32.mxu0 %v1332
  %2313 = vmatmul.mubr.f32.gmra.mrb[0].mxu0 %v1330
  %v2314 = vpop.f32.mrb[0].mxu0
  %v2315 = vadd.f32 %v1861, %v2314
  %v2316 = vpop.f32.mrb[0].mxu0
  %v2317 = vadd.f32 %v1865, %v2316
  %2318 = vdwg.mxu0
  %2319 = vmatprep.subr.mxu0 %v1347
  %2320 = vmatpush1.msra.mxu0 %v1346
  %2321 = vmatprep.subr.mxu0 %v1362
  %2322 = vmatpush1.msra.mxu0 %v1361
  %2323 = vmatprep.subr.mxu0 %v1377
  %2324 = vmatpush1.msra.mxu0 %v1376
  %2325 = vmatprep.subr.mxu0 %v1392
  %2326 = vmatpush1.msra.mxu0 %v1391
  %2327 = vmatprep.subr.mxu0 %v1407
  %2328 = vmatpush1.msra.mxu0 %v1406
  %2329 = vmatprep.subr.mxu0 %v1422
  %2330 = vmatpush1.msra.mxu0 %v1421
  %2331 = vmatprep.subr.mxu0 %v1437
  %2332 = vmatpush1.msra.mxu0 %v1436
  %2333 = vmatprep.subr.mxu0 %v1452
  %2334 = vmatpush1.msra.mxu0 %v1451
  %2335 = vmatprep.subr.mxu0 %v1467
  %2336 = vmatpush1.msra.mxu0 %v1466
  %2337 = vmatprep.subr.mxu0 %v1482
  %2338 = vmatpush1.msra.mxu0 %v1481
  %2339 = vmatprep.subr.mxu0 %v1497
  %2340 = vmatpush1.msra.mxu0 %v1496
  %2341 = vmatprep.subr.mxu0 %v1512
  %2342 = vmatpush1.msra.mxu0 %v1511
  %2343 = vmatprep.subr.mxu0 %v1527
  %2344 = vmatpush1.msra.mxu0 %v1526
  %2345 = vmatprep.subr.mxu0 %v1542
  %2346 = vmatpush1.msra.mxu0 %v1541
  %2347 = vmatprep.subr.mxu0 %v1557
  %2348 = vmatpush1.msra.mxu0 %v1556
  %2349 = vmatprep.subr.mxu0 %v1572
  %2350 = vmatpush1.msra.mxu0 %v1571
  %2351 = vmatprep.subr.mxu0 %v1587
  %2352 = vmatpush1.msra.mxu0 %v1586
  %2353 = vmatprep.subr.mxu0 %v1602
  %2354 = vmatpush1.msra.mxu0 %v1601
  %2355 = vmatprep.subr.mxu0 %v1617
  %2356 = vmatpush1.msra.mxu0 %v1616
  %2357 = vmatprep.subr.mxu0 %v1632
  %2358 = vmatpush1.msra.mxu0 %v1631
  %2359 = vmatprep.subr.mxu0 %v1647
  %2360 = vmatpush1.msra.mxu0 %v1646
  %2361 = vmatprep.subr.mxu0 %v1662
  %2362 = vmatpush1.msra.mxu0 %v1661
  %2363 = vmatprep.subr.mxu0 %v1677
  %2364 = vmatpush1.msra.mxu0 %v1676
  %2365 = vmatprep.subr.mxu0 %v1692
  %2366 = vmatpush1.msra.mxu0 %v1691
  %2367 = vmatprep.subr.mxu0 %v1707
  %2368 = vmatpush1.msra.mxu0 %v1706
  %2369 = vmatprep.subr.mxu0 %v1722
  %2370 = vmatpush1.msra.mxu0 %v1721
  %2371 = vmatprep.subr.mxu0 %v1737
  %2372 = vmatpush1.msra.mxu0 %v1736
  %2373 = vmatprep.subr.mxu0 %v1752
  %2374 = vmatpush1.msra.mxu0 %v1751
  %2375 = vmatprep.subr.mxu0 %v1767
  %2376 = vmatpush1.msra.mxu0 %v1766
  %2377 = vmatprep.subr.mxu0 %v1782
  %2378 = vmatpush1.msra.mxu0 %v1781
  %2379 = vmatprep.subr.mxu0 %v1797
  %2380 = vmatpush1.msra.mxu0 %v1796
  %2381 = vmatprep.subr.mxu0 %v1812
  %2382 = vmatpush1.msra.mxu0 %v1811
  %2383 = vmatprep.mubr.f32.mxu0 %v1332
  %2384 = vmatmul.mubr.f32.gmra.mrb[0].mxu0 %v1330
  %v2385 = vpop.f32.mrb[0].mxu0
  %v2386 = vadd.f32 %v1869, %v2385
  %v2387 = vpop.f32.mrb[0].mxu0
  %v2388 = vadd.f32 %v1873, %v2387
  %2389 = vdwg.mxu0
  %2390 = vmatprep.subr.mxu0 0.0
  %2391 = vmatpush1.msra.mxu0 %v1348
  %2392 = vmatprep.subr.mxu0 0.0
  %2393 = vmatpush1.msra.mxu0 %v1363
  %2394 = vmatprep.subr.mxu0 0.0
  %2395 = vmatpush1.msra.mxu0 %v1378
  %2396 = vmatprep.subr.mxu0 0.0
  %2397 = vmatpush1.msra.mxu0 %v1393
  %2398 = vmatprep.subr.mxu0 0.0
  %2399 = vmatpush1.msra.mxu0 %v1408
  %2400 = vmatprep.subr.mxu0 0.0
  %2401 = vmatpush1.msra.mxu0 %v1423
  %2402 = vmatprep.subr.mxu0 0.0
  %2403 = vmatpush1.msra.mxu0 %v1438
  %2404 = vmatprep.subr.mxu0 0.0
  %2405 = vmatpush1.msra.mxu0 %v1453
  %2406 = vmatprep.subr.mxu0 0.0
  %2407 = vmatpush1.msra.mxu0 %v1468
  %2408 = vmatprep.subr.mxu0 0.0
  %2409 = vmatpush1.msra.mxu0 %v1483
  %2410 = vmatprep.subr.mxu0 0.0
  %2411 = vmatpush1.msra.mxu0 %v1498
  %2412 = vmatprep.subr.mxu0 0.0
  %2413 = vmatpush1.msra.mxu0 %v1513
  %2414 = vmatprep.subr.mxu0 0.0
  %2415 = vmatpush1.msra.mxu0 %v1528
  %2416 = vmatprep.subr.mxu0 0.0
  %2417 = vmatpush1.msra.mxu0 %v1543
  %2418 = vmatprep.subr.mxu0 0.0
  %2419 = vmatpush1.msra.mxu0 %v1558
  %2420 = vmatprep.subr.mxu0 0.0
  %2421 = vmatpush1.msra.mxu0 %v1573
  %2422 = vmatprep.subr.mxu0 0.0
  %2423 = vmatpush1.msra.mxu0 %v1588
  %2424 = vmatprep.subr.mxu0 0.0
  %2425 = vmatpush1.msra.mxu0 %v1603
  %2426 = vmatprep.subr.mxu0 0.0
  %2427 = vmatpush1.msra.mxu0 %v1618
  %2428 = vmatprep.subr.mxu0 0.0
  %2429 = vmatpush1.msra.mxu0 %v1633
  %2430 = vmatprep.subr.mxu0 0.0
  %2431 = vmatpush1.msra.mxu0 %v1648
  %2432 = vmatprep.subr.mxu0 0.0
  %2433 = vmatpush1.msra.mxu0 %v1663
  %2434 = vmatprep.subr.mxu0 0.0
  %2435 = vmatpush1.msra.mxu0 %v1678
  %2436 = vmatprep.subr.mxu0 0.0
  %2437 = vmatpush1.msra.mxu0 %v1693
  %2438 = vmatprep.subr.mxu0 0.0
  %2439 = vmatpush1.msra.mxu0 %v1708
  %2440 = vmatprep.subr.mxu0 0.0
  %2441 = vmatpush1.msra.mxu0 %v1723
  %2442 = vmatprep.subr.mxu0 0.0
  %2443 = vmatpush1.msra.mxu0 %v1738
  %2444 = vmatprep.subr.mxu0 0.0
  %2445 = vmatpush1.msra.mxu0 %v1753
  %2446 = vmatprep.subr.mxu0 0.0
  %2447 = vmatpush1.msra.mxu0 %v1768
  %2448 = vmatprep.subr.mxu0 0.0
  %2449 = vmatpush1.msra.mxu0 %v1783
  %2450 = vmatprep.subr.mxu0 0.0
  %2451 = vmatpush1.msra.mxu0 %v1798
  %2452 = vmatprep.subr.mxu0 0.0
  %2453 = vmatpush1.msra.mxu0 %v1813
  %2454 = vmatprep.mubr.f32.mxu0 %v1332
  %2455 = vmatmul.mubr.f32.gmra.mrb[0].mxu0 %v1330
  %v2456 = vpop.f32.mrb[0].mxu0
  %v2457 = vadd.f32 %v1877, %v2456
  %v2458 = vpop.f32.mrb[0].mxu0
  %2459 = vdwg.mxu0
  %2460 = vst [vmem:[%s9] sm:$0xff] %v1960
  %2461 = vst [vmem:[%s9 + $0x8] sm:$0xff] %v1962
  %2462 = vst [vmem:[%s9 + $0x10] sm:$0xff] %v2031
  %2463 = vst [vmem:[%s9 + $0x18] sm:$0xff] %v2033
  %2464 = vst [vmem:[%s9 + $0x20] sm:$0xff] %v2102
  %2465 = vst [vmem:[%s9 + $0x28] sm:$0xff] %v2104
  %2466 = vst [vmem:[%s9 + $0x30] sm:$0xff] %v2173
  %2467 = vst [vmem:[%s9 + $0x38] sm:$0xff] %v2175
  %2468 = vst [vmem:[%s9 + $0x40] sm:$0xff] %v2244
  %2469 = vst [vmem:[%s9 + $0x48] sm:$0xff] %v2246
  %2470 = vst [vmem:[%s9 + $0x50] sm:$0xff] %v2315
  %2471 = vst [vmem:[%s9 + $0x58] sm:$0xff] %v2317
  %2472 = vst [vmem:[%s9 + $0x60] sm:$0xff] %v2386
  %2473 = vst [vmem:[%s9 + $0x68] sm:$0xff] %v2388
  %2474 = vst [vmem:[%s9 + $0x70] sm:$0xff] %v2457
  // Predicated region
  $region38: #{autoencoder_forward.1} parent=0 // pred_check
    _
  $region39: #{autoencoder_forward.1} parent=0 // pred_check_branch
    %2476 = sbr.rel (0) target = $region41
  $region40: #{autoencoder_forward.1} parent=0 // pred_region
    _
  $region41: #{autoencoder_forward.1} parent=0 // pred_fallthru
    _
  // Predicated region
  $region42: #{autoencoder_forward.1} parent=0 // pred_check
    _
  $region43: #{autoencoder_forward.1} parent=0 // pred_check_branch
    %2478 = sbr.rel (0) target = $region45
  $region44: #{autoencoder_forward.1} parent=0 // pred_region
    _
  $region45: #{autoencoder_forward.1} parent=0 // pred_fallthru
    _
  // Predicated region
  $region46: #{autoencoder_forward.1} parent=0 // pred_check
    _
  $region47: #{autoencoder_forward.1} parent=0 // pred_check_branch
    %2480 = sbr.rel (0) target = $region49
  $region48: #{autoencoder_forward.1} parent=0 // pred_region
    _
  $region49: #{autoencoder_forward.1} parent=0 // pred_fallthru
    _
  // Predicated region
  $region50: #{autoencoder_forward.1} parent=0 // pred_check
    _
  $region51: #{autoencoder_forward.1} parent=0 // pred_check_branch
    %2482 = sbr.rel (0) target = $region53
  $region52: #{autoencoder_forward.1} parent=0 // pred_region
    _
  $region53: #{autoencoder_forward.1} parent=0 // pred_fallthru
    _

</llo_original>
